<compile_context>
chip_gen: v7x
topology: tpu7x:2x2x1
jax: 0.10.0
libtpu: 0.0.40
codegen_flags: <defaults>
</compile_context>

<pallas_src>
import functools

import jax
import jax.numpy as jnp
from jax.experimental import pallas as pl
from jax.experimental.pallas import tpu as pltpu


def _round_up(x, m):
    return ((x + m - 1) // m) * m


def critic_kernel(sa_ref, w1_ref, b1_ref, w2_ref, b2_ref, w3_ref, b3_ref,
                  q_ref):
    # Layer 1: single K-packed contraction.  bf16 operands -> f32 accumulate.
    sa = sa_ref[...].astype(jnp.bfloat16)
    h1 = jnp.dot(sa, w1_ref[...], preferred_element_type=jnp.float32)
    h1 = jnp.maximum(h1 + b1_ref[...], 0.0)                 # f32 VPU epilogue

    # Layer 2: bf16 operands -> f32 accumulate, f32 epilogue.
    h2 = jnp.dot(h1.astype(jnp.bfloat16), w2_ref[...],
                 preferred_element_type=jnp.float32)
    h2 = jnp.maximum(h2 + b2_ref[...], 0.0)

    # Layer 3 (1 output unit): VPU broadcast-mul + XLU lane reduce (f32)
    # instead of pushing an N=1 tile through the MXU.  b3 is an SMEM scalar.
    q = jnp.sum(h2 * w3_ref[...], axis=-1, keepdims=True) + b3_ref[0, 0]
    q_ref[...] = q.astype(q_ref.dtype)


def prepare_critic_params(params):
    """One-time conversion from PyTorch (out, in) layout to kernel layout.

    Returns (w1_packed_bf16, b1_f32, w2t_bf16, b2_f32, w3_row_f32, b3_smem).
    """
    w1, b1, w2, b2, w3, b3 = [jnp.asarray(p, jnp.float32) for p in params]
    k = w1.shape[1]                                   # state_dim + action_dim
    k_pad = _round_up(k, 32)                          # lane-dense 128B/row f32
    w1p = jnp.pad(w1.T, ((0, k_pad - k), (0, 0)))     # (k_pad, H1), zero rows
    return (w1p.astype(jnp.bfloat16),
            b1.reshape(1, -1),
            w2.T.astype(jnp.bfloat16),                # (H1, H2)
            b2.reshape(1, -1),
            w3.reshape(1, -1),                        # (1, H2), stays f32
            b3.reshape(1, 1))                         # SMEM scalar


def _choose_tb(batch, block_batch):
    """Batch tile: multiple of 128 rows, <= block_batch, and split into >= 2
    tiles whenever the batch spans >= 2 granules (feeds both v7x TCs)."""
    max_tb = max(128, (int(block_batch) // 128) * 128)
    g = -(-batch // 128)                              # 128-row granules
    if g <= 1:
        return 128
    return min(max_tb, 128 * ((g + 1) // 2))


@functools.partial(jax.jit, static_argnames=("block_batch",))
def critic_forward(state, action, kparams, block_batch=1024):
    """Pallas implementation of Critic.forward / Critic.Q1.

    state: [..., state_dim], action: [..., action_dim]  ->  [..., 1]
    kparams: output of prepare_critic_params.
    """
    w1p, b1, w2t, b2, w3, b3 = kparams
    k_pad, h1 = w1p.shape
    h2 = w2t.shape[1]

    lead_shape = state.shape[:-1]
    s2 = state.reshape(-1, state.shape[-1]).astype(jnp.float32)
    a2 = action.reshape(-1, action.shape[-1]).astype(jnp.float32)
    batch = s2.shape[0]
    k = s2.shape[-1] + a2.shape[-1]
    assert k <= k_pad, (k, k_pad)

    # Pack state||action once in the wrapper; pad columns to k_pad (exact:
    # the matching w1p rows are zero).  Single contiguous lane-dense DMA.
    sa = jnp.concatenate([s2, a2], axis=-1)
    if k_pad != k:
        sa = jnp.pad(sa, ((0, 0), (0, k_pad - k)))

    tb = _choose_tb(batch, block_batch)
    grid = (pl.cdiv(batch, tb),)          # ragged last block handled by Pallas

    const = lambda i: (0, 0)              # weights resident across grid steps

    q = pl.pallas_call(
        critic_kernel,
        out_shape=jax.ShapeDtypeStruct((batch, 1), jnp.float32),
        grid=grid,
        in_specs=[
            pl.BlockSpec((tb, k_pad), lambda i: (i, 0)),     # packed sa tile
            pl.BlockSpec((k_pad, h1), const),                # W1 packed (bf16)
            pl.BlockSpec((1, h1), const),                    # b1 (f32)
            pl.BlockSpec((h1, h2), const),                   # W2^T (bf16)
            pl.BlockSpec((1, h2), const),                    # b2 (f32)
            pl.BlockSpec((1, h2), const),                    # w3 row (f32)
            pl.BlockSpec(memory_space=pltpu.MemorySpace.SMEM),  # b3 scalar
        ],
        out_specs=pl.BlockSpec((tb, 1), lambda i: (i, 0)),
        compiler_params=pltpu.CompilerParams(
            dimension_semantics=("parallel",),
        ),
    )(sa, w1p, b1, w2t, b2, w3, b3)

    return q.reshape(lead_shape + (1,))


def init_critic_params(key, state_dim, action_dim, hidden_sizes=(400, 300)):
    """PyTorch-Linear-style init, PyTorch (out, in) layout."""
    dims_in = (state_dim + action_dim, hidden_sizes[0], hidden_sizes[1])
    dims_out = (hidden_sizes[0], hidden_sizes[1], 1)
    params = []
    for fi, fo in zip(dims_in, dims_out):
        kw, kb, key = jax.random.split(key, 3)
        bound = 1.0 / jnp.sqrt(jnp.asarray(fi, jnp.float32))
        w = jax.random.uniform(kw, (fo, fi), jnp.float32, -bound, bound)
        b = jax.random.uniform(kb, (fo,), jnp.float32, -bound, bound)
        params += [w, b]
    return tuple(params)


def critic_reference(state, action, params):
    """Plain-JAX f32 reference mirroring the PyTorch forward."""
    w1, b1, w2, b2, w3, b3 = params
    sa = jnp.concatenate([state, action], axis=-1)
    q = jax.nn.relu(jnp.dot(sa, w1.T) + b1)
    q = jax.nn.relu(jnp.dot(q, w2.T) + b2)
    return jnp.dot(q, w3.T) + b3


def critic_reference_bf16(state, action, params):
    """Reference that mirrors the kernel's bf16-operand / f32-accumulate math."""
    w1, b1, w2, b2, w3, b3 = params
    sa = jnp.concatenate([state, action], axis=-1).astype(jnp.float32)
    h1 = jnp.dot(sa.astype(jnp.bfloat16), w1.T.astype(jnp.bfloat16),
                 preferred_element_type=jnp.float32)
    h1 = jnp.maximum(h1 + b1, 0.0)
    h2 = jnp.dot(h1.astype(jnp.bfloat16), w2.T.astype(jnp.bfloat16),
                 preferred_element_type=jnp.float32)
    h2 = jnp.maximum(h2 + b2, 0.0)
    return jnp.dot(h2, w3.T) + b3


if __name__ == "__main__":
    key = jax.random.PRNGKey(0)
    k_s, k_a, k_s3, k_a3, k_p = jax.random.split(key, 5)

    state_dim, action_dim = 17, 6
    hidden_sizes = (400, 300)            # module defaults

    params = init_critic_params(k_p, state_dim, action_dim, hidden_sizes)
    kparams = prepare_critic_params(params)

    # 2-D branch (batch of transitions).
    state = jax.random.normal(k_s, (8, state_dim), jnp.float32)
    action = jax.random.normal(k_a, (8, action_dim), jnp.float32)
    q = jax.block_until_ready(critic_forward(state, action, kparams))
    assert q.shape == (8, 1), q.shape
    q_bf = critic_reference_bf16(state, action, params)
    q_f32 = critic_reference(state, action, params)
    # Tight check against the math the kernel actually performs (bf16 MXU).
    assert jnp.allclose(q, q_bf, atol=5e-4, rtol=5e-4), (q, q_bf)
    # Looser check against the full-f32 PyTorch-equivalent reference
    # (documents the deliberate bf16 precision trade-off).
    assert jnp.allclose(q, q_f32, atol=3e-2, rtol=3e-2), (q, q_f32)

    # 3-D branch (cat along last dim, as in the PyTorch module).
    state3 = jax.random.normal(k_s3, (2, 5, state_dim), jnp.float32)
    action3 = jax.random.normal(k_a3, (2, 5, action_dim), jnp.float32)
    q3 = jax.block_until_ready(critic_forward(state3, action3, kparams))
    assert q3.shape == (2, 5, 1), q3.shape
    q3_bf = critic_reference_bf16(state3, action3, params)
    q3_f32 = critic_reference(state3, action3, params)
    assert jnp.allclose(q3, q3_bf, atol=5e-4, rtol=5e-4), (q3, q3_bf)
    assert jnp.allclose(q3, q3_f32, atol=3e-2, rtol=3e-2), (q3, q3_f32)

    print("KERNEL_OK")
</pallas_src>

<mosaic_0001>
module attributes {stable_mosaic.version = 11 : i64} {
  func.func @critic_kernel(%arg0: i32, %arg1: memref<128x32xf32, #tpu.memory_space<vmem>>, %arg2: memref<32x400xbf16, #tpu.memory_space<vmem>>, %arg3: memref<1x400xf32, #tpu.memory_space<vmem>>, %arg4: memref<400x300xbf16, #tpu.memory_space<vmem>>, %arg5: memref<1x300xf32, #tpu.memory_space<vmem>>, %arg6: memref<1x300xf32, #tpu.memory_space<vmem>>, %arg7: memref<1x1xf32, #tpu.memory_space<smem>>, %arg8: memref<128x1xf32, #tpu.memory_space<vmem>>) attributes {dimension_semantics = [#tpu.dimension_semantics<parallel>], iteration_bounds = array<i64: 1>, scalar_prefetch = 0 : i64, scratch_operands = 0 : i64, tpu.core_type = #tpu.core_type<tc>, window_params = [{transform_indices = @transform_0, window_bounds = array<i64: 128, 32>}, {pipeline_mode = #tpu.pipeline_mode<synchronous>, transform_indices = @transform_1, window_bounds = array<i64: 32, 400>}, {pipeline_mode = #tpu.pipeline_mode<synchronous>, transform_indices = @transform_2, window_bounds = array<i64: 1, 400>}, {pipeline_mode = #tpu.pipeline_mode<synchronous>, transform_indices = @transform_3, window_bounds = array<i64: 400, 300>}, {pipeline_mode = #tpu.pipeline_mode<synchronous>, transform_indices = @transform_4, window_bounds = array<i64: 1, 300>}, {pipeline_mode = #tpu.pipeline_mode<synchronous>, transform_indices = @transform_5, window_bounds = array<i64: 1, 300>}, {transform_indices = @transform_6, window_bounds = array<i64: 1, 1>}, {transform_indices = @transform_7, window_bounds = array<i64: 128, 1>}]} {
    %c0 = arith.constant 0 : index
    %c0_0 = arith.constant 0 : index
    %0 = vector.load %arg1[%c0, %c0_0] : memref<128x32xf32, #tpu.memory_space<vmem>>, vector<128x32xf32>
    %1 = arith.truncf %0 : vector<128x32xf32> to vector<128x32xbf16>
    %c0_1 = arith.constant 0 : index
    %c0_2 = arith.constant 0 : index
    %2 = vector.load %arg2[%c0_1, %c0_2] : memref<32x400xbf16, #tpu.memory_space<vmem>>, vector<32x400xbf16>
    %cst = arith.constant dense<0.000000e+00> : vector<128x400xf32>
    %3 = tpu.matmul %1, %2, %cst {dimension_numbers = #tpu.dot_dimension_numbers<[1], [0], [0], [1], [0, 0, 1, 1], [], []>} : vector<128x32xbf16>, vector<32x400xbf16>, vector<128x400xf32> -> vector<128x400xf32>
    %c0_3 = arith.constant 0 : index
    %c0_4 = arith.constant 0 : index
    %4 = vector.load %arg3[%c0_3, %c0_4] : memref<1x400xf32, #tpu.memory_space<vmem>>, vector<1x400xf32>
    %5 = vector.broadcast %4 : vector<1x400xf32> to vector<128x400xf32>
    %6 = arith.addf %3, %5 : vector<128x400xf32>
    %cst_5 = arith.constant 0.000000e+00 : f32
    %7 = vector.broadcast %cst_5 : f32 to vector<128x400xf32>
    %8 = arith.maximumf %6, %7 : vector<128x400xf32>
    %9 = arith.truncf %8 : vector<128x400xf32> to vector<128x400xbf16>
    %c0_6 = arith.constant 0 : index
    %c0_7 = arith.constant 0 : index
    %10 = vector.load %arg4[%c0_6, %c0_7] : memref<400x300xbf16, #tpu.memory_space<vmem>>, vector<400x300xbf16>
    %cst_8 = arith.constant dense<0.000000e+00> : vector<128x300xf32>
    %11 = tpu.matmul %9, %10, %cst_8 {dimension_numbers = #tpu.dot_dimension_numbers<[1], [0], [0], [1], [0, 0, 1, 1], [], []>} : vector<128x400xbf16>, vector<400x300xbf16>, vector<128x300xf32> -> vector<128x300xf32>
    %c0_9 = arith.constant 0 : index
    %c0_10 = arith.constant 0 : index
    %12 = vector.load %arg5[%c0_9, %c0_10] : memref<1x300xf32, #tpu.memory_space<vmem>>, vector<1x300xf32>
    %13 = vector.broadcast %12 : vector<1x300xf32> to vector<128x300xf32>
    %14 = arith.addf %11, %13 : vector<128x300xf32>
    %cst_11 = arith.constant 0.000000e+00 : f32
    %15 = vector.broadcast %cst_11 : f32 to vector<128x300xf32>
    %16 = arith.maximumf %14, %15 : vector<128x300xf32>
    %c0_12 = arith.constant 0 : index
    %c0_13 = arith.constant 0 : index
    %17 = vector.load %arg6[%c0_12, %c0_13] : memref<1x300xf32, #tpu.memory_space<vmem>>, vector<1x300xf32>
    %18 = vector.broadcast %17 : vector<1x300xf32> to vector<128x300xf32>
    %19 = arith.mulf %16, %18 : vector<128x300xf32>
    %cst_14 = arith.constant dense<0.000000e+00> : vector<128xf32>
    %20 = vector.multi_reduction <add>, %19, %cst_14 [1] : vector<128x300xf32> to vector<128xf32>
    %21 = vector.shape_cast %20 : vector<128xf32> to vector<128x1xf32>
    %c0_15 = arith.constant 0 : index
    %c0_16 = arith.constant 0 : index
    %22 = memref.load %arg7[%c0_15, %c0_16] : memref<1x1xf32, #tpu.memory_space<smem>>
    %23 = vector.broadcast %22 : f32 to vector<128x1xf32>
    %24 = arith.addf %21, %23 : vector<128x1xf32>
    %c0_17 = arith.constant 0 : index
    %c0_18 = arith.constant 0 : index
    %25 = vector.load %arg8[%c0_17, %c0_18] : memref<128x1xf32, #tpu.memory_space<vmem>>, vector<128x1xf32>
    tpu.vector_store %arg8[%c0_17, %c0_18], %24 {strides = array<i32>} : memref<128x1xf32, #tpu.memory_space<vmem>>, vector<128x1xf32>,
    return
  }
  func.func @transform_0(%arg0: i32) -> (i32, i32) {
    %c0_i32 = arith.constant 0 : i32
    %c0_i32_0 = arith.constant 0 : i32
    return %arg0, %c0_i32 : i32, i32
  }
  func.func @transform_1(%arg0: i32) -> (i32, i32) {
    %c0_i32 = arith.constant 0 : i32
    %c0_i32_0 = arith.constant 0 : i32
    %c0_i32_1 = arith.constant 0 : i32
    return %c0_i32, %c0_i32_0 : i32, i32
  }
  func.func @transform_2(%arg0: i32) -> (i32, i32) {
    %c0_i32 = arith.constant 0 : i32
    %c0_i32_0 = arith.constant 0 : i32
    %c0_i32_1 = arith.constant 0 : i32
    return %c0_i32, %c0_i32_0 : i32, i32
  }
  func.func @transform_3(%arg0: i32) -> (i32, i32) {
    %c0_i32 = arith.constant 0 : i32
    %c0_i32_0 = arith.constant 0 : i32
    %c0_i32_1 = arith.constant 0 : i32
    return %c0_i32, %c0_i32_0 : i32, i32
  }
  func.func @transform_4(%arg0: i32) -> (i32, i32) {
    %c0_i32 = arith.constant 0 : i32
    %c0_i32_0 = arith.constant 0 : i32
    %c0_i32_1 = arith.constant 0 : i32
    return %c0_i32, %c0_i32_0 : i32, i32
  }
  func.func @transform_5(%arg0: i32) -> (i32, i32) {
    %c0_i32 = arith.constant 0 : i32
    %c0_i32_0 = arith.constant 0 : i32
    %c0_i32_1 = arith.constant 0 : i32
    return %c0_i32, %c0_i32_0 : i32, i32
  }
  func.func @transform_6(%arg0: i32) -> (i32, i32) {
    %c0_i32 = arith.constant 0 : i32
    %c0_i32_0 = arith.constant 0 : i32
    %c0_i32_1 = arith.constant 0 : i32
    return %c0_i32, %c0_i32_0 : i32, i32
  }
  func.func @transform_7(%arg0: i32) -> (i32, i32) {
    %c0_i32 = arith.constant 0 : i32
    %c0_i32_0 = arith.constant 0 : i32
    return %arg0, %c0_i32 : i32, i32
  }
}

</mosaic_0001>

<llo_original>
// kernel: critic_forward.1
$region0: #{critic_forward.1}
  #allocation0 [shape = 'u32[]', space=smem, size = 0x4, offset = 0x4, fixed_abs, tag = 'smem constant byte address 0x4 - core index']
  #allocation1 [shape = 'u32[144,128]{1,0:T(1,128)}', space=vmem, size = 0x12000, scoped, tag = 'internal scratch']
  #allocation2 [shape = 'f32[1,1]{1,0:T(1,128)S(6)}', space=smem, size = 0x200, scoped, tag = 'scoped memory for critic_forward.1']
  %s0 = inlined_call_operand.vmem [shape: f32[8,32], index: 0, kind: input, shape index: {}]
  %s1 = inlined_call_operand.hbm [shape: bf16[32,400], index: 1, kind: input, shape index: {}]
  %s2 = inlined_call_operand.vmem [shape: f32[1,400], index: 2, kind: input, shape index: {}]
  %s3 = inlined_call_operand.hbm [shape: bf16[400,300], index: 3, kind: input, shape index: {}]
  %s4 = inlined_call_operand.vmem [shape: f32[1,300], index: 4, kind: input, shape index: {}]
  %s5 = inlined_call_operand.vmem [shape: f32[1,300], index: 5, kind: input, shape index: {}]
  %s6 = inlined_call_operand.<no memory space> [shape: f32[1,1], index: 6, kind: input, shape index: {}]
  %s7 = inlined_call_operand.vmem [shape: f32[8,1], index: 7, kind: output, shape index: {}]
  %s8 = sld [smem:[#allocation0]]
  $region80: #{critic_forward.1} parent=0
    _
  %s10 = ssub.s32 1, %s8
  %s11 = scalar_select 0, %s10, %s8
  %12 = sst [smem:[#allocation2]] %s6
  $region1: #{critic_forward.1} parent=0
    #allocation3 [shape = 'u8[32768]{0}', space=vmem, size = 0x8000, scoped, tag = 'input window, operand 1, single buffered']
    #allocation4 [shape = 's32[1]{0}', space=sflag, size = 0x4, scoped, tag = 'scoped memory for critic_forward.1']
    #allocation5 [shape = 'u8[307200]{0}', space=vmem, size = 0x4b000, scoped, tag = 'input window, operand 3, single buffered']
    #allocation6 [shape = 's32[1]{0}', space=sflag, size = 0x4, scoped, tag = 'scoped memory for critic_forward.1']
    #allocation7 [shape = 'u8[65536]{0}', space=vmem, size = 0x10000, scoped, tag = 'output window, operand 0, single buffered']
    %13 = vsyncpa [#allocation4], 0
    %14 = vsyncpa [#allocation6], 0
    // Predicated region
    $region2: #{critic_forward.1} parent=1 // pred_check
      _
    $region3: #{critic_forward.1} parent=1 // pred_check_branch
      %16 = sbr.rel (0) target = $region5
    $region4: #{critic_forward.1} parent=1 // pred_region
      _
    $region5: #{critic_forward.1} parent=1 // pred_fallthru
      _
    // Predicated region
    $region6: #{critic_forward.1} parent=1 // pred_check
      _
    $region7: #{critic_forward.1} parent=1 // pred_check_branch
      %18 = sbr.rel (0) target = $region9
    $region8: #{critic_forward.1} parent=1 // pred_region
      %s20 = ssub.s32 1024, 1024
      %21 = vsyncadd [#allocation4], %s20
      %s22 = sshll.u32 [#allocation3], 4
      %s23 = int_to_ptr.vmem [resolvable:$true] %s22
      %28 = dma.hbm_to_vmem [thread:$0]  %s1, 1024, %s23, [#allocation4], 256, 256, 16
    $region9: #{critic_forward.1} parent=1 // pred_fallthru
      _
    // Predicated region
    $region10: #{critic_forward.1} parent=1 // pred_check
      _
    $region11: #{critic_forward.1} parent=1 // pred_check_branch
      %30 = sbr.rel (0) target = $region13
    $region12: #{critic_forward.1} parent=1 // pred_region
      _
    $region13: #{critic_forward.1} parent=1 // pred_fallthru
      _
    // Predicated region
    $region14: #{critic_forward.1} parent=1 // pred_check
      _
    $region15: #{critic_forward.1} parent=1 // pred_check_branch
      %32 = sbr.rel (0) target = $region17
    $region16: #{critic_forward.1} parent=1 // pred_region
      %s34 = ssub.s32 9600, 9600
      %35 = vsyncadd [#allocation6], %s34
      %s36 = sshll.u32 [#allocation5], 4
      %s37 = int_to_ptr.vmem [resolvable:$true] %s36
      %42 = dma.hbm_to_vmem [thread:$0]  %s3, 9600, %s37, [#allocation6], 192, 192, 12
    $region17: #{critic_forward.1} parent=1 // pred_fallthru
      _
    // Predicated region
    $region18: #{critic_forward.1} parent=1 // pred_check
      _
    $region19: #{critic_forward.1} parent=1 // pred_check_branch
      %44 = sbr.rel (0) target = $region21
    $region20: #{critic_forward.1} parent=1 // pred_region
      _
    $region21: #{critic_forward.1} parent=1 // pred_fallthru
      _
    // Predicated region
    $region22: #{critic_forward.1} parent=1 // pred_check
      _
    $region23: #{critic_forward.1} parent=1 // pred_check_branch
      %46 = sbr.rel (0) target = $region25
    $region24: #{critic_forward.1} parent=1 // pred_region
      _
    $region25: #{critic_forward.1} parent=1 // pred_fallthru
      _
    // Predicated region
    $region26: #{critic_forward.1} parent=1 // pred_check
      _
    $region27: #{critic_forward.1} parent=1 // pred_check_branch
      %48 = sbr.rel (0) target = $region29
    $region28: #{critic_forward.1} parent=1 // pred_region
      _
    $region29: #{critic_forward.1} parent=1 // pred_fallthru
      _
    // Predicated region
    $region30: #{critic_forward.1} parent=1 // pred_check
      _
    $region31: #{critic_forward.1} parent=1 // pred_check_branch
      %50 = sbr.rel (0) target = $region33
    $region32: #{critic_forward.1} parent=1 // pred_region
      %51 = dma.done [#allocation4], 1024
    $region33: #{critic_forward.1} parent=1 // pred_fallthru
      _
    // Predicated region
    $region34: #{critic_forward.1} parent=1 // pred_check
      _
    $region35: #{critic_forward.1} parent=1 // pred_check_branch
      %53 = sbr.rel (0) target = $region37
    $region36: #{critic_forward.1} parent=1 // pred_region
      %54 = dma.done [#allocation6], 9600
    $region37: #{critic_forward.1} parent=1 // pred_fallthru
      _
    %v56 = vld [vmem:[%s0] sm:$0xff]
    %v57 = vld [vmem:[%s0 + $0x8] sm:$0xff]
    %v58 = vld [vmem:[%s0 + $0x10] sm:$0xff]
    %v59 = vld [vmem:[%s0 + $0x18] sm:$0xff]
    %v60 = vld [vmem:[%s0 + $0x20] sm:$0xff]
    %v61 = vld [vmem:[%s0 + $0x28] sm:$0xff]
    %v62 = vld [vmem:[%s0 + $0x30] sm:$0xff]
    %v63 = vld [vmem:[%s0 + $0x38] sm:$0xff]
    %v64 = vld [vmem:[%s0 + $0x40] sm:$0xff]
    %v65 = vld [vmem:[%s0 + $0x48] sm:$0xff]
    %v66 = vld [vmem:[%s0 + $0x50] sm:$0xff]
    %v67 = vld [vmem:[%s0 + $0x58] sm:$0xff]
    %v68 = vld [vmem:[%s0 + $0x60] sm:$0xff]
    %v69 = vld [vmem:[%s0 + $0x68] sm:$0xff]
    %v70 = vld [vmem:[%s0 + $0x70] sm:$0xff]
    %v71 = vld [vmem:[%s0 + $0x78] sm:$0xff]
    %v72 = vpack.c.bf16 %v57, %v56
    %v73 = vpack.c.bf16 %v59, %v58
    %v74 = vpack.c.bf16 %v61, %v60
    %v75 = vpack.c.bf16 %v63, %v62
    %v76 = vpack.c.bf16 %v65, %v64
    %v77 = vpack.c.bf16 %v67, %v66
    %v78 = vpack.c.bf16 %v69, %v68
    %v79 = vpack.c.bf16 %v71, %v70
    %v80 = vld [vmem:[#allocation3] sm:$0xff]
    %v81 = vld [vmem:[#allocation3 + $0x8] sm:$0xff]
    %v82 = vld [vmem:[#allocation3 + $0x10] sm:$0xff]
    %v83 = vld [vmem:[#allocation3 + $0x18] sm:$0xff]
    %v84 = vld [vmem:[#allocation3 + $0x20] sm:$0xff]
    %v85 = vld [vmem:[#allocation3 + $0x28] sm:$0xff]
    %v86 = vld [vmem:[#allocation3 + $0x30] sm:$0xff]
    %v87 = vld [vmem:[#allocation3 + $0x38] sm:$0xff]
    %v88 = vld [vmem:[%s2] sm:$0xf]
    %v90 = vlaneseq
    %v91 = vshrl.u32 %v90, 7
    %v92 = vsub.s32 0, %v91
    %v93 = vrot.slane %v88, %v92
    %v94 = vlaneseq
    %v95 = vshrl.u32 %v94, 7
    %v96 = vsub.s32 1, %v95
    %v97 = vrot.slane %v88, %v96
    %v98 = vlaneseq
    %v99 = vshrl.u32 %v98, 7
    %v100 = vsub.s32 2, %v99
    %v101 = vrot.slane %v88, %v100
    %v102 = vlaneseq
    %v103 = vshrl.u32 %v102, 7
    %v104 = vsub.s32 3, %v103
    %v105 = vrot.slane %v88, %v104
    %v118 = vunpack.c.l.b16 %v80
    %v119 = vunpack.c.h.b16 %v80
    %v120 = vunpack.c.l.b16 %v81
    %v121 = vunpack.c.h.b16 %v81
    %v122 = vunpack.c.l.b16 %v82
    %v123 = vunpack.c.h.b16 %v82
    %v124 = vunpack.c.l.b16 %v83
    %v125 = vunpack.c.h.b16 %v83
    %v126 = vunpack.c.l.b16 %v84
    %v127 = vunpack.c.h.b16 %v84
    %v128 = vunpack.c.l.b16 %v85
    %v129 = vunpack.c.h.b16 %v85
    %v130 = vunpack.c.l.b16 %v86
    %v131 = vunpack.c.h.b16 %v86
    %v132 = vunpack.c.l.b16 %v87
    %v133 = vunpack.c.h.b16 %v87
    %v134 = vpack.c.b16 %v122, %v118
    %v135 = vpack.c.b16 %v123, %v119
    %v136 = vpack.c.b16 %v124, %v120
    %v137 = vpack.c.b16 %v125, %v121
    %v138 = vpack.c.b16 %v130, %v126
    %v139 = vpack.c.b16 %v131, %v127
    %v140 = vpack.c.b16 %v132, %v128
    %v141 = vpack.c.b16 %v133, %v129
    %vm150 = vcmask 261120
    %v152 = vsel %vm150, %v72, 0
    %v155 = vsel %vm150, %v73, 0
    %v158 = vsel %vm150, %v74, 0
    %v161 = vsel %vm150, %v75, 0
    %v164 = vsel %vm150, %v76, 0
    %v167 = vsel %vm150, %v77, 0
    %v170 = vsel %vm150, %v78, 0
    %v173 = vsel %vm150, %v79, 0
    %175 = vmatprep.subr.bf16.mxu0 %v135
    %176 = vmatpush1.bf16.msra.mxu0 %v134
    %177 = vmatprep.subr.bf16.mxu0 %v139
    %178 = vmatpush1.bf16.msra.mxu0 %v138
    %179 = vmatprep.subr.bf16.mxu0 0
    %180 = vmatpush1.bf16.msra.mxu0 0
    %181 = vmatprep.subr.bf16.mxu0 0
    %182 = vmatpush1.bf16.msra.mxu0 0
    %183 = vmatprep.subr.bf16.mxu0 0
    %184 = vmatpush1.bf16.msra.mxu0 0
    %185 = vmatprep.subr.bf16.mxu0 0
    %186 = vmatpush1.bf16.msra.mxu0 0
    %187 = vmatprep.subr.bf16.mxu0 0
    %188 = vmatpush1.bf16.msra.mxu0 0
    %189 = vmatprep.subr.bf16.mxu0 0
    %190 = vmatpush1.bf16.msra.mxu0 0
    %191 = vmatprep.subr.bf16.mxu0 0
    %192 = vmatpush1.bf16.msra.mxu0 0
    %193 = vmatprep.subr.bf16.mxu0 0
    %194 = vmatpush1.bf16.msra.mxu0 0
    %195 = vmatprep.subr.bf16.mxu0 0
    %196 = vmatpush1.bf16.msra.mxu0 0
    %197 = vmatprep.subr.bf16.mxu0 0
    %198 = vmatpush1.bf16.msra.mxu0 0
    %199 = vmatprep.subr.bf16.mxu0 0
    %200 = vmatpush1.bf16.msra.mxu0 0
    %201 = vmatprep.subr.bf16.mxu0 0
    %202 = vmatpush1.bf16.msra.mxu0 0
    %203 = vmatprep.subr.bf16.mxu0 0
    %204 = vmatpush1.bf16.msra.mxu0 0
    %205 = vmatprep.subr.bf16.mxu0 0
    %206 = vmatpush1.bf16.msra.mxu0 0
    %207 = vmatprep.mubr.bf16.mxu0 0
    %208 = vmatmul.mubr.bf16.gmra.mrb[0].mxu0 %v152
    %v209 = vpop.f32.mrb[0].mxu0
    %v210 = vadd.f32 %v93, %v209
    %v211 = vpop.f32.mrb[0].mxu0
    %v212 = vadd.f32 %v97, %v211
    %v213 = vpop.f32.mrb[0].mxu0
    %v214 = vadd.f32 %v93, %v213
    %v215 = vpop.f32.mrb[0].mxu0
    %v216 = vadd.f32 %v97, %v215
    %217 = vmatprep.mubr.bf16.mxu0 0
    %218 = vmatmul.mubr.bf16.gmra.mrb[0].mxu0 %v155
    %v219 = vpop.f32.mrb[0].mxu0
    %v220 = vadd.f32 %v93, %v219
    %v221 = vpop.f32.mrb[0].mxu0
    %v222 = vadd.f32 %v97, %v221
    %v223 = vpop.f32.mrb[0].mxu0
    %v224 = vadd.f32 %v93, %v223
    %v225 = vpop.f32.mrb[0].mxu0
    %v226 = vadd.f32 %v97, %v225
    %227 = vmatprep.mubr.bf16.mxu0 0
    %228 = vmatmul.mubr.bf16.gmra.mrb[0].mxu0 %v158
    %v229 = vpop.f32.mrb[0].mxu0
    %v230 = vadd.f32 %v93, %v229
    %v231 = vpop.f32.mrb[0].mxu0
    %v232 = vadd.f32 %v97, %v231
    %v233 = vpop.f32.mrb[0].mxu0
    %v234 = vadd.f32 %v93, %v233
    %v235 = vpop.f32.mrb[0].mxu0
    %v236 = vadd.f32 %v97, %v235
    %237 = vmatprep.mubr.bf16.mxu0 0
    %238 = vmatmul.mubr.bf16.gmra.mrb[0].mxu0 %v161
    %v239 = vpop.f32.mrb[0].mxu0
    %v240 = vadd.f32 %v93, %v239
    %v241 = vpop.f32.mrb[0].mxu0
    %v242 = vadd.f32 %v97, %v241
    %v243 = vpop.f32.mrb[0].mxu0
    %v244 = vadd.f32 %v93, %v243
    %v245 = vpop.f32.mrb[0].mxu0
    %v246 = vadd.f32 %v97, %v245
    %247 = vmatprep.mubr.bf16.mxu0 0
    %248 = vmatmul.mubr.bf16.gmra.mrb[0].mxu0 %v164
    %v249 = vpop.f32.mrb[0].mxu0
    %v250 = vadd.f32 %v93, %v249
    %v251 = vpop.f32.mrb[0].mxu0
    %v252 = vadd.f32 %v97, %v251
    %v253 = vpop.f32.mrb[0].mxu0
    %v254 = vadd.f32 %v93, %v253
    %v255 = vpop.f32.mrb[0].mxu0
    %v256 = vadd.f32 %v97, %v255
    %257 = vmatprep.mubr.bf16.mxu0 0
    %258 = vmatmul.mubr.bf16.gmra.mrb[0].mxu0 %v167
    %v259 = vpop.f32.mrb[0].mxu0
    %v260 = vadd.f32 %v93, %v259
    %v261 = vpop.f32.mrb[0].mxu0
    %v262 = vadd.f32 %v97, %v261
    %v263 = vpop.f32.mrb[0].mxu0
    %v264 = vadd.f32 %v93, %v263
    %v265 = vpop.f32.mrb[0].mxu0
    %v266 = vadd.f32 %v97, %v265
    %267 = vmatprep.mubr.bf16.mxu0 0
    %268 = vmatmul.mubr.bf16.gmra.mrb[0].mxu0 %v170
    %v269 = vpop.f32.mrb[0].mxu0
    %v270 = vadd.f32 %v93, %v269
    %v271 = vpop.f32.mrb[0].mxu0
    %v272 = vadd.f32 %v97, %v271
    %v273 = vpop.f32.mrb[0].mxu0
    %v274 = vadd.f32 %v93, %v273
    %v275 = vpop.f32.mrb[0].mxu0
    %v276 = vadd.f32 %v97, %v275
    %277 = vmatprep.mubr.bf16.mxu0 0
    %278 = vmatmul.mubr.bf16.gmra.mrb[0].mxu0 %v173
    %v279 = vpop.f32.mrb[0].mxu0
    %v280 = vadd.f32 %v93, %v279
    %v281 = vpop.f32.mrb[0].mxu0
    %v282 = vadd.f32 %v97, %v281
    %v283 = vpop.f32.mrb[0].mxu0
    %v284 = vadd.f32 %v93, %v283
    %v285 = vpop.f32.mrb[0].mxu0
    %v286 = vadd.f32 %v97, %v285
    %287 = vdwg.mxu0
    %288 = vmatprep.subr.bf16.mxu0 %v137
    %289 = vmatpush1.bf16.msra.mxu0 %v136
    %290 = vmatprep.subr.bf16.mxu0 %v141
    %291 = vmatpush1.bf16.msra.mxu0 %v140
    %292 = vmatprep.subr.bf16.mxu0 0
    %293 = vmatpush1.bf16.msra.mxu0 0
    %294 = vmatprep.subr.bf16.mxu0 0
    %295 = vmatpush1.bf16.msra.mxu0 0
    %296 = vmatprep.subr.bf16.mxu0 0
    %297 = vmatpush1.bf16.msra.mxu0 0
    %298 = vmatprep.subr.bf16.mxu0 0
    %299 = vmatpush1.bf16.msra.mxu0 0
    %300 = vmatprep.subr.bf16.mxu0 0
    %301 = vmatpush1.bf16.msra.mxu0 0
    %302 = vmatprep.subr.bf16.mxu0 0
    %303 = vmatpush1.bf16.msra.mxu0 0
    %304 = vmatprep.subr.bf16.mxu0 0
    %305 = vmatpush1.bf16.msra.mxu0 0
    %306 = vmatprep.subr.bf16.mxu0 0
    %307 = vmatpush1.bf16.msra.mxu0 0
    %308 = vmatprep.subr.bf16.mxu0 0
    %309 = vmatpush1.bf16.msra.mxu0 0
    %310 = vmatprep.subr.bf16.mxu0 0
    %311 = vmatpush1.bf16.msra.mxu0 0
    %312 = vmatprep.subr.bf16.mxu0 0
    %313 = vmatpush1.bf16.msra.mxu0 0
    %314 = vmatprep.subr.bf16.mxu0 0
    %315 = vmatpush1.bf16.msra.mxu0 0
    %316 = vmatprep.subr.bf16.mxu0 0
    %317 = vmatpush1.bf16.msra.mxu0 0
    %318 = vmatprep.subr.bf16.mxu0 0
    %319 = vmatpush1.bf16.msra.mxu0 0
    %320 = vmatprep.mubr.bf16.mxu0 0
    %321 = vmatmul.mubr.bf16.gmra.mrb[0].mxu0 %v152
    %v322 = vpop.f32.mrb[0].mxu0
    %v323 = vadd.f32 %v101, %v322
    %v324 = vpop.f32.mrb[0].mxu0
    %v325 = vadd.f32 %v105, %v324
    %v326 = vpop.f32.mrb[0].mxu0
    %v327 = vadd.f32 %v101, %v326
    %v328 = vpop.f32.mrb[0].mxu0
    %v329 = vadd.f32 %v105, %v328
    %330 = vmatprep.mubr.bf16.mxu0 0
    %331 = vmatmul.mubr.bf16.gmra.mrb[0].mxu0 %v155
    %v332 = vpop.f32.mrb[0].mxu0
    %v333 = vadd.f32 %v101, %v332
    %v334 = vpop.f32.mrb[0].mxu0
    %v335 = vadd.f32 %v105, %v334
    %v336 = vpop.f32.mrb[0].mxu0
    %v337 = vadd.f32 %v101, %v336
    %v338 = vpop.f32.mrb[0].mxu0
    %v339 = vadd.f32 %v105, %v338
    %340 = vmatprep.mubr.bf16.mxu0 0
    %341 = vmatmul.mubr.bf16.gmra.mrb[0].mxu0 %v158
    %v342 = vpop.f32.mrb[0].mxu0
    %v343 = vadd.f32 %v101, %v342
    %v344 = vpop.f32.mrb[0].mxu0
    %v345 = vadd.f32 %v105, %v344
    %v346 = vpop.f32.mrb[0].mxu0
    %v347 = vadd.f32 %v101, %v346
    %v348 = vpop.f32.mrb[0].mxu0
    %v349 = vadd.f32 %v105, %v348
    %350 = vmatprep.mubr.bf16.mxu0 0
    %351 = vmatmul.mubr.bf16.gmra.mrb[0].mxu0 %v161
    %v352 = vpop.f32.mrb[0].mxu0
    %v353 = vadd.f32 %v101, %v352
    %v354 = vpop.f32.mrb[0].mxu0
    %v355 = vadd.f32 %v105, %v354
    %v356 = vpop.f32.mrb[0].mxu0
    %v357 = vadd.f32 %v101, %v356
    %v358 = vpop.f32.mrb[0].mxu0
    %v359 = vadd.f32 %v105, %v358
    %360 = vmatprep.mubr.bf16.mxu0 0
    %361 = vmatmul.mubr.bf16.gmra.mrb[0].mxu0 %v164
    %v362 = vpop.f32.mrb[0].mxu0
    %v363 = vadd.f32 %v101, %v362
    %v364 = vpop.f32.mrb[0].mxu0
    %v365 = vadd.f32 %v105, %v364
    %v366 = vpop.f32.mrb[0].mxu0
    %v367 = vadd.f32 %v101, %v366
    %v368 = vpop.f32.mrb[0].mxu0
    %v369 = vadd.f32 %v105, %v368
    %370 = vmatprep.mubr.bf16.mxu0 0
    %371 = vmatmul.mubr.bf16.gmra.mrb[0].mxu0 %v167
    %v372 = vpop.f32.mrb[0].mxu0
    %v373 = vadd.f32 %v101, %v372
    %v374 = vpop.f32.mrb[0].mxu0
    %v375 = vadd.f32 %v105, %v374
    %v376 = vpop.f32.mrb[0].mxu0
    %v377 = vadd.f32 %v101, %v376
    %v378 = vpop.f32.mrb[0].mxu0
    %v379 = vadd.f32 %v105, %v378
    %380 = vmatprep.mubr.bf16.mxu0 0
    %381 = vmatmul.mubr.bf16.gmra.mrb[0].mxu0 %v170
    %v382 = vpop.f32.mrb[0].mxu0
    %v383 = vadd.f32 %v101, %v382
    %v384 = vpop.f32.mrb[0].mxu0
    %v385 = vadd.f32 %v105, %v384
    %v386 = vpop.f32.mrb[0].mxu0
    %v387 = vadd.f32 %v101, %v386
    %v388 = vpop.f32.mrb[0].mxu0
    %v389 = vadd.f32 %v105, %v388
    %390 = vmatprep.mubr.bf16.mxu0 0
    %391 = vmatmul.mubr.bf16.gmra.mrb[0].mxu0 %v173
    %v392 = vpop.f32.mrb[0].mxu0
    %v393 = vadd.f32 %v101, %v392
    %v394 = vpop.f32.mrb[0].mxu0
    %v395 = vadd.f32 %v105, %v394
    %v396 = vpop.f32.mrb[0].mxu0
    %v397 = vadd.f32 %v101, %v396
    %v398 = vpop.f32.mrb[0].mxu0
    %v399 = vadd.f32 %v105, %v398
    %400 = vdwg.mxu0
    %v401 = vmax.f32 %v210, 0.0
    %v402 = vmax.f32 %v212, 0.0
    %v403 = vmax.f32 %v323, 0.0
    %v404 = vmax.f32 %v325, 0.0
    %v405 = vmax.f32 %v214, 0.0
    %v406 = vmax.f32 %v216, 0.0
    %v407 = vmax.f32 %v327, 0.0
    %v408 = vmax.f32 %v329, 0.0
    %v409 = vmax.f32 %v220, 0.0
    %v410 = vmax.f32 %v222, 0.0
    %v411 = vmax.f32 %v333, 0.0
    %v412 = vmax.f32 %v335, 0.0
    %v413 = vmax.f32 %v224, 0.0
    %v414 = vmax.f32 %v226, 0.0
    %v415 = vmax.f32 %v337, 0.0
    %v416 = vmax.f32 %v339, 0.0
    %v417 = vmax.f32 %v230, 0.0
    %v418 = vmax.f32 %v232, 0.0
    %v419 = vmax.f32 %v343, 0.0
    %v420 = vmax.f32 %v345, 0.0
    %v421 = vmax.f32 %v234, 0.0
    %v422 = vmax.f32 %v236, 0.0
    %v423 = vmax.f32 %v347, 0.0
    %v424 = vmax.f32 %v349, 0.0
    %v425 = vmax.f32 %v240, 0.0
    %v426 = vmax.f32 %v242, 0.0
    %v427 = vmax.f32 %v353, 0.0
    %v428 = vmax.f32 %v355, 0.0
    %v429 = vmax.f32 %v244, 0.0
    %v430 = vmax.f32 %v246, 0.0
    %v431 = vmax.f32 %v357, 0.0
    %v432 = vmax.f32 %v359, 0.0
    %v433 = vmax.f32 %v250, 0.0
    %v434 = vmax.f32 %v252, 0.0
    %v435 = vmax.f32 %v363, 0.0
    %v436 = vmax.f32 %v365, 0.0
    %v437 = vmax.f32 %v254, 0.0
    %v438 = vmax.f32 %v256, 0.0
    %v439 = vmax.f32 %v367, 0.0
    %v440 = vmax.f32 %v369, 0.0
    %v441 = vmax.f32 %v260, 0.0
    %v442 = vmax.f32 %v262, 0.0
    %v443 = vmax.f32 %v373, 0.0
    %v444 = vmax.f32 %v375, 0.0
    %v445 = vmax.f32 %v264, 0.0
    %v446 = vmax.f32 %v266, 0.0
    %v447 = vmax.f32 %v377, 0.0
    %v448 = vmax.f32 %v379, 0.0
    %v449 = vmax.f32 %v270, 0.0
    %v450 = vmax.f32 %v272, 0.0
    %v451 = vmax.f32 %v383, 0.0
    %v452 = vmax.f32 %v385, 0.0
    %v453 = vmax.f32 %v274, 0.0
    %v454 = vmax.f32 %v276, 0.0
    %v455 = vmax.f32 %v387, 0.0
    %v456 = vmax.f32 %v389, 0.0
    %v457 = vmax.f32 %v280, 0.0
    %v458 = vmax.f32 %v282, 0.0
    %v459 = vmax.f32 %v393, 0.0
    %v460 = vmax.f32 %v395, 0.0
    %v461 = vmax.f32 %v284, 0.0
    %v462 = vmax.f32 %v286, 0.0
    %v463 = vmax.f32 %v397, 0.0
    %v464 = vmax.f32 %v399, 0.0
    %v465 = vpack.c.bf16 %v405, %v401
    %v466 = vpack.c.bf16 %v406, %v402
    %v467 = vpack.c.bf16 %v407, %v403
    %v468 = vpack.c.bf16 %v408, %v404
    %v469 = vpack.c.bf16 %v413, %v409
    %v470 = vpack.c.bf16 %v414, %v410
    %v471 = vpack.c.bf16 %v415, %v411
    %v472 = vpack.c.bf16 %v416, %v412
    %v473 = vpack.c.bf16 %v421, %v417
    %v474 = vpack.c.bf16 %v422, %v418
    %v475 = vpack.c.bf16 %v423, %v419
    %v476 = vpack.c.bf16 %v424, %v420
    %v477 = vpack.c.bf16 %v429, %v425
    %v478 = vpack.c.bf16 %v430, %v426
    %v479 = vpack.c.bf16 %v431, %v427
    %v480 = vpack.c.bf16 %v432, %v428
    %v481 = vpack.c.bf16 %v437, %v433
    %v482 = vpack.c.bf16 %v438, %v434
    %v483 = vpack.c.bf16 %v439, %v435
    %v484 = vpack.c.bf16 %v440, %v436
    %v485 = vpack.c.bf16 %v445, %v441
    %v486 = vpack.c.bf16 %v446, %v442
    %v487 = vpack.c.bf16 %v447, %v443
    %v488 = vpack.c.bf16 %v448, %v444
    %v489 = vpack.c.bf16 %v453, %v449
    %v490 = vpack.c.bf16 %v454, %v450
    %v491 = vpack.c.bf16 %v455, %v451
    %v492 = vpack.c.bf16 %v456, %v452
    %v493 = vpack.c.bf16 %v461, %v457
    %v494 = vpack.c.bf16 %v462, %v458
    %v495 = vpack.c.bf16 %v463, %v459
    %v496 = vpack.c.bf16 %v464, %v460
    %v497 = vld [vmem:[#allocation5] sm:$0xff]
    %v498 = vld [vmem:[#allocation5 + $0x8] sm:$0xf]
    %v499 = vld [vmem:[#allocation5 + $0xc] sm:$0xff]
    %v500 = vld [vmem:[#allocation5 + $0x14] sm:$0xf]
    %v501 = vld [vmem:[#allocation5 + $0x18] sm:$0xff]
    %v502 = vld [vmem:[#allocation5 + $0x20] sm:$0xf]
    %v503 = vld [vmem:[#allocation5 + $0x24] sm:$0xff]
    %v504 = vld [vmem:[#allocation5 + $0x2c] sm:$0xf]
    %v505 = vld [vmem:[#allocation5 + $0x30] sm:$0xff]
    %v506 = vld [vmem:[#allocation5 + $0x38] sm:$0xf]
    %v507 = vld [vmem:[#allocation5 + $0x3c] sm:$0xff]
    %v508 = vld [vmem:[#allocation5 + $0x44] sm:$0xf]
    %v509 = vld [vmem:[#allocation5 + $0x48] sm:$0xff]
    %v510 = vld [vmem:[#allocation5 + $0x50] sm:$0xf]
    %v511 = vld [vmem:[#allocation5 + $0x54] sm:$0xff]
    %v512 = vld [vmem:[#allocation5 + $0x5c] sm:$0xf]
    %v513 = vld [vmem:[#allocation5 + $0x60] sm:$0xff]
    %v514 = vld [vmem:[#allocation5 + $0x68] sm:$0xf]
    %v515 = vld [vmem:[#allocation5 + $0x6c] sm:$0xff]
    %v516 = vld [vmem:[#allocation5 + $0x74] sm:$0xf]
    %v517 = vld [vmem:[#allocation5 + $0x78] sm:$0xff]
    %v518 = vld [vmem:[#allocation5 + $0x80] sm:$0xf]
    %v519 = vld [vmem:[#allocation5 + $0x84] sm:$0xff]
    %v520 = vld [vmem:[#allocation5 + $0x8c] sm:$0xf]
    %v521 = vld [vmem:[#allocation5 + $0x90] sm:$0xff]
    %v522 = vld [vmem:[#allocation5 + $0x98] sm:$0xf]
    %v523 = vld [vmem:[#allocation5 + $0x9c] sm:$0xff]
    %v524 = vld [vmem:[#allocation5 + $0xa4] sm:$0xf]
    %v525 = vld [vmem:[#allocation5 + $0xa8] sm:$0xff]
    %v526 = vld [vmem:[#allocation5 + $0xb0] sm:$0xf]
    %v527 = vld [vmem:[#allocation5 + $0xb4] sm:$0xff]
    %v528 = vld [vmem:[#allocation5 + $0xbc] sm:$0xf]
    %v529 = vld [vmem:[#allocation5 + $0xc0] sm:$0xff]
    %v530 = vld [vmem:[#allocation5 + $0xc8] sm:$0xf]
    %v531 = vld [vmem:[#allocation5 + $0xcc] sm:$0xff]
    %v532 = vld [vmem:[#allocation5 + $0xd4] sm:$0xf]
    %v533 = vld [vmem:[#allocation5 + $0xd8] sm:$0xff]
    %v534 = vld [vmem:[#allocation5 + $0xe0] sm:$0xf]
    %v535 = vld [vmem:[#allocation5 + $0xe4] sm:$0xff]
    %v536 = vld [vmem:[#allocation5 + $0xec] sm:$0xf]
    %v537 = vld [vmem:[#allocation5 + $0xf0] sm:$0xff]
    %v538 = vld [vmem:[#allocation5 + $0xf8] sm:$0xf]
    %v539 = vld [vmem:[#allocation5 + $0xfc] sm:$0xff]
    %v540 = vld [vmem:[#allocation5 + $0x104] sm:$0xf]
    %v541 = vld [vmem:[#allocation5 + $0x108] sm:$0xff]
    %v542 = vld [vmem:[#allocation5 + $0x110] sm:$0xf]
    %v543 = vld [vmem:[#allocation5 + $0x114] sm:$0xff]
    %v544 = vld [vmem:[#allocation5 + $0x11c] sm:$0xf]
    %v545 = vld [vmem:[#allocation5 + $0x120] sm:$0xff]
    %v546 = vld [vmem:[#allocation5 + $0x128] sm:$0xf]
    %v547 = vld [vmem:[#allocation5 + $0x12c] sm:$0xff]
    %v548 = vld [vmem:[#allocation5 + $0x134] sm:$0xf]
    %v549 = vld [vmem:[#allocation5 + $0x138] sm:$0xff]
    %v550 = vld [vmem:[#allocation5 + $0x140] sm:$0xf]
    %v551 = vld [vmem:[#allocation5 + $0x144] sm:$0xff]
    %v552 = vld [vmem:[#allocation5 + $0x14c] sm:$0xf]
    %v553 = vld [vmem:[#allocation5 + $0x150] sm:$0xff]
    %v554 = vld [vmem:[#allocation5 + $0x158] sm:$0xf]
    %v555 = vld [vmem:[#allocation5 + $0x15c] sm:$0xff]
    %v556 = vld [vmem:[#allocation5 + $0x164] sm:$0xf]
    %v557 = vld [vmem:[#allocation5 + $0x168] sm:$0xff]
    %v558 = vld [vmem:[#allocation5 + $0x170] sm:$0xf]
    %v559 = vld [vmem:[#allocation5 + $0x174] sm:$0xff]
    %v560 = vld [vmem:[#allocation5 + $0x17c] sm:$0xf]
    %v561 = vld [vmem:[#allocation5 + $0x180] sm:$0xff]
    %v562 = vld [vmem:[#allocation5 + $0x188] sm:$0xf]
    %v563 = vld [vmem:[#allocation5 + $0x18c] sm:$0xff]
    %v564 = vld [vmem:[#allocation5 + $0x194] sm:$0xf]
    %v565 = vld [vmem:[#allocation5 + $0x198] sm:$0xff]
    %v566 = vld [vmem:[#allocation5 + $0x1a0] sm:$0xf]
    %v567 = vld [vmem:[#allocation5 + $0x1a4] sm:$0xff]
    %v568 = vld [vmem:[#allocation5 + $0x1ac] sm:$0xf]
    %v569 = vld [vmem:[#allocation5 + $0x1b0] sm:$0xff]
    %v570 = vld [vmem:[#allocation5 + $0x1b8] sm:$0xf]
    %v571 = vld [vmem:[#allocation5 + $0x1bc] sm:$0xff]
    %v572 = vld [vmem:[#allocation5 + $0x1c4] sm:$0xf]
    %v573 = vld [vmem:[#allocation5 + $0x1c8] sm:$0xff]
    %v574 = vld [vmem:[#allocation5 + $0x1d0] sm:$0xf]
    %v575 = vld [vmem:[#allocation5 + $0x1d4] sm:$0xff]
    %v576 = vld [vmem:[#allocation5 + $0x1dc] sm:$0xf]
    %v577 = vld [vmem:[#allocation5 + $0x1e0] sm:$0xff]
    %v578 = vld [vmem:[#allocation5 + $0x1e8] sm:$0xf]
    %v579 = vld [vmem:[#allocation5 + $0x1ec] sm:$0xff]
    %v580 = vld [vmem:[#allocation5 + $0x1f4] sm:$0xf]
    %v581 = vld [vmem:[#allocation5 + $0x1f8] sm:$0xff]
    %v582 = vld [vmem:[#allocation5 + $0x200] sm:$0xf]
    %v583 = vld [vmem:[#allocation5 + $0x204] sm:$0xff]
    %v584 = vld [vmem:[#allocation5 + $0x20c] sm:$0xf]
    %v585 = vld [vmem:[#allocation5 + $0x210] sm:$0xff]
    %v586 = vld [vmem:[#allocation5 + $0x218] sm:$0xf]
    %v587 = vld [vmem:[#allocation5 + $0x21c] sm:$0xff]
    %v588 = vld [vmem:[#allocation5 + $0x224] sm:$0xf]
    %v589 = vld [vmem:[#allocation5 + $0x228] sm:$0xff]
    %v590 = vld [vmem:[#allocation5 + $0x230] sm:$0xf]
    %v591 = vld [vmem:[#allocation5 + $0x234] sm:$0xff]
    %v592 = vld [vmem:[#allocation5 + $0x23c] sm:$0xf]
    %v593 = vld [vmem:[#allocation5 + $0x240] sm:$0xff]
    %v594 = vld [vmem:[#allocation5 + $0x248] sm:$0xf]
    %v595 = vld [vmem:[#allocation5 + $0x24c] sm:$0xff]
    %v596 = vld [vmem:[#allocation5 + $0x254] sm:$0xf]
    %v597 = vld [vmem:[%s4] sm:$0x7]
    %v599 = vlaneseq
    %v600 = vshrl.u32 %v599, 7
    %v601 = vsub.s32 0, %v600
    %v602 = vrot.slane %v597, %v601
    %v603 = vlaneseq
    %v604 = vshrl.u32 %v603, 7
    %v605 = vsub.s32 1, %v604
    %v606 = vrot.slane %v597, %v605
    %v607 = vlaneseq
    %v608 = vshrl.u32 %v607, 7
    %v609 = vsub.s32 2, %v608
    %v610 = vrot.slane %v597, %v609
    %v714 = vunpack.c.l.b16 %v497
    %v715 = vunpack.c.h.b16 %v497
    %v716 = vunpack.c.l.b16 %v498
    %v717 = vunpack.c.l.b16 %v499
    %v718 = vunpack.c.h.b16 %v499
    %v719 = vunpack.c.l.b16 %v500
    %v720 = vunpack.c.l.b16 %v501
    %v721 = vunpack.c.h.b16 %v501
    %v722 = vunpack.c.l.b16 %v502
    %v723 = vunpack.c.l.b16 %v503
    %v724 = vunpack.c.h.b16 %v503
    %v725 = vunpack.c.l.b16 %v504
    %v726 = vunpack.c.l.b16 %v505
    %v727 = vunpack.c.h.b16 %v505
    %v728 = vunpack.c.l.b16 %v506
    %v729 = vunpack.c.l.b16 %v507
    %v730 = vunpack.c.h.b16 %v507
    %v731 = vunpack.c.l.b16 %v508
    %v732 = vunpack.c.l.b16 %v509
    %v733 = vunpack.c.h.b16 %v509
    %v734 = vunpack.c.l.b16 %v510
    %v735 = vunpack.c.l.b16 %v511
    %v736 = vunpack.c.h.b16 %v511
    %v737 = vunpack.c.l.b16 %v512
    %v738 = vunpack.c.l.b16 %v513
    %v739 = vunpack.c.h.b16 %v513
    %v740 = vunpack.c.l.b16 %v514
    %v741 = vunpack.c.l.b16 %v515
    %v742 = vunpack.c.h.b16 %v515
    %v743 = vunpack.c.l.b16 %v516
    %v744 = vunpack.c.l.b16 %v517
    %v745 = vunpack.c.h.b16 %v517
    %v746 = vunpack.c.l.b16 %v518
    %v747 = vunpack.c.l.b16 %v519
    %v748 = vunpack.c.h.b16 %v519
    %v749 = vunpack.c.l.b16 %v520
    %v750 = vunpack.c.l.b16 %v521
    %v751 = vunpack.c.h.b16 %v521
    %v752 = vunpack.c.l.b16 %v522
    %v753 = vunpack.c.l.b16 %v523
    %v754 = vunpack.c.h.b16 %v523
    %v755 = vunpack.c.l.b16 %v524
    %v756 = vunpack.c.l.b16 %v525
    %v757 = vunpack.c.h.b16 %v525
    %v758 = vunpack.c.l.b16 %v526
    %v759 = vunpack.c.l.b16 %v527
    %v760 = vunpack.c.h.b16 %v527
    %v761 = vunpack.c.l.b16 %v528
    %v762 = vunpack.c.l.b16 %v529
    %v763 = vunpack.c.h.b16 %v529
    %v764 = vunpack.c.l.b16 %v530
    %v765 = vunpack.c.l.b16 %v531
    %v766 = vunpack.c.h.b16 %v531
    %v767 = vunpack.c.l.b16 %v532
    %v768 = vunpack.c.l.b16 %v533
    %v769 = vunpack.c.h.b16 %v533
    %v770 = vunpack.c.l.b16 %v534
    %v771 = vunpack.c.l.b16 %v535
    %v772 = vunpack.c.h.b16 %v535
    %v773 = vunpack.c.l.b16 %v536
    %v774 = vunpack.c.l.b16 %v537
    %v775 = vunpack.c.h.b16 %v537
    %v776 = vunpack.c.l.b16 %v538
    %v777 = vunpack.c.l.b16 %v539
    %v778 = vunpack.c.h.b16 %v539
    %v779 = vunpack.c.l.b16 %v540
    %v780 = vunpack.c.l.b16 %v541
    %v781 = vunpack.c.h.b16 %v541
    %v782 = vunpack.c.l.b16 %v542
    %v783 = vunpack.c.l.b16 %v543
    %v784 = vunpack.c.h.b16 %v543
    %v785 = vunpack.c.l.b16 %v544
    %v786 = vunpack.c.l.b16 %v545
    %v787 = vunpack.c.h.b16 %v545
    %v788 = vunpack.c.l.b16 %v546
    %v789 = vunpack.c.l.b16 %v547
    %v790 = vunpack.c.h.b16 %v547
    %v791 = vunpack.c.l.b16 %v548
    %v792 = vunpack.c.l.b16 %v549
    %v793 = vunpack.c.h.b16 %v549
    %v794 = vunpack.c.l.b16 %v550
    %v795 = vunpack.c.l.b16 %v551
    %v796 = vunpack.c.h.b16 %v551
    %v797 = vunpack.c.l.b16 %v552
    %v798 = vunpack.c.l.b16 %v553
    %v799 = vunpack.c.h.b16 %v553
    %v800 = vunpack.c.l.b16 %v554
    %v801 = vunpack.c.l.b16 %v555
    %v802 = vunpack.c.h.b16 %v555
    %v803 = vunpack.c.l.b16 %v556
    %v804 = vunpack.c.l.b16 %v557
    %v805 = vunpack.c.h.b16 %v557
    %v806 = vunpack.c.l.b16 %v558
    %v807 = vunpack.c.l.b16 %v559
    %v808 = vunpack.c.h.b16 %v559
    %v809 = vunpack.c.l.b16 %v560
    %v810 = vunpack.c.l.b16 %v561
    %v811 = vunpack.c.h.b16 %v561
    %v812 = vunpack.c.l.b16 %v562
    %v813 = vunpack.c.l.b16 %v563
    %v814 = vunpack.c.h.b16 %v563
    %v815 = vunpack.c.l.b16 %v564
    %v816 = vunpack.c.l.b16 %v565
    %v817 = vunpack.c.h.b16 %v565
    %v818 = vunpack.c.l.b16 %v566
    %v819 = vunpack.c.l.b16 %v567
    %v820 = vunpack.c.h.b16 %v567
    %v821 = vunpack.c.l.b16 %v568
    %v822 = vunpack.c.l.b16 %v569
    %v823 = vunpack.c.h.b16 %v569
    %v824 = vunpack.c.l.b16 %v570
    %v825 = vunpack.c.l.b16 %v571
    %v826 = vunpack.c.h.b16 %v571
    %v827 = vunpack.c.l.b16 %v572
    %v828 = vunpack.c.l.b16 %v573
    %v829 = vunpack.c.h.b16 %v573
    %v830 = vunpack.c.l.b16 %v574
    %v831 = vunpack.c.l.b16 %v575
    %v832 = vunpack.c.h.b16 %v575
    %v833 = vunpack.c.l.b16 %v576
    %v834 = vunpack.c.l.b16 %v577
    %v835 = vunpack.c.h.b16 %v577
    %v836 = vunpack.c.l.b16 %v578
    %v837 = vunpack.c.l.b16 %v579
    %v838 = vunpack.c.h.b16 %v579
    %v839 = vunpack.c.l.b16 %v580
    %v840 = vunpack.c.l.b16 %v581
    %v841 = vunpack.c.h.b16 %v581
    %v842 = vunpack.c.l.b16 %v582
    %v843 = vunpack.c.l.b16 %v583
    %v844 = vunpack.c.h.b16 %v583
    %v845 = vunpack.c.l.b16 %v584
    %v846 = vunpack.c.l.b16 %v585
    %v847 = vunpack.c.h.b16 %v585
    %v848 = vunpack.c.l.b16 %v586
    %v849 = vunpack.c.l.b16 %v587
    %v850 = vunpack.c.h.b16 %v587
    %v851 = vunpack.c.l.b16 %v588
    %v852 = vunpack.c.l.b16 %v589
    %v853 = vunpack.c.h.b16 %v589
    %v854 = vunpack.c.l.b16 %v590
    %v855 = vunpack.c.l.b16 %v591
    %v856 = vunpack.c.h.b16 %v591
    %v857 = vunpack.c.l.b16 %v592
    %v858 = vunpack.c.l.b16 %v593
    %v859 = vunpack.c.h.b16 %v593
    %v860 = vunpack.c.l.b16 %v594
    %v861 = vunpack.c.l.b16 %v595
    %v862 = vunpack.c.h.b16 %v595
    %v863 = vunpack.c.l.b16 %v596
    %v864 = vpack.c.b16 %v717, %v714
    %v865 = vpack.c.b16 %v718, %v715
    %v866 = vpack.c.b16 %v719, %v716
    %v867 = vpack.c.b16 %v723, %v720
    %v868 = vpack.c.b16 %v724, %v721
    %v869 = vpack.c.b16 %v725, %v722
    %v870 = vpack.c.b16 %v729, %v726
    %v871 = vpack.c.b16 %v730, %v727
    %v872 = vpack.c.b16 %v731, %v728
    %v873 = vpack.c.b16 %v735, %v732
    %v874 = vpack.c.b16 %v736, %v733
    %v875 = vpack.c.b16 %v737, %v734
    %v876 = vpack.c.b16 %v741, %v738
    %v877 = vpack.c.b16 %v742, %v739
    %v878 = vpack.c.b16 %v743, %v740
    %v879 = vpack.c.b16 %v747, %v744
    %v880 = vpack.c.b16 %v748, %v745
    %v881 = vpack.c.b16 %v749, %v746
    %v882 = vpack.c.b16 %v753, %v750
    %v883 = vpack.c.b16 %v754, %v751
    %v884 = vpack.c.b16 %v755, %v752
    %v885 = vpack.c.b16 %v759, %v756
    %v886 = vpack.c.b16 %v760, %v757
    %v887 = vpack.c.b16 %v761, %v758
    %v888 = vpack.c.b16 %v765, %v762
    %v889 = vpack.c.b16 %v766, %v763
    %v890 = vpack.c.b16 %v767, %v764
    %v891 = vpack.c.b16 %v771, %v768
    %v892 = vpack.c.b16 %v772, %v769
    %v893 = vpack.c.b16 %v773, %v770
    %v894 = vpack.c.b16 %v777, %v774
    %v895 = vpack.c.b16 %v778, %v775
    %v896 = vpack.c.b16 %v779, %v776
    %v897 = vpack.c.b16 %v783, %v780
    %v898 = vpack.c.b16 %v784, %v781
    %v899 = vpack.c.b16 %v785, %v782
    %v900 = vpack.c.b16 %v789, %v786
    %v901 = vpack.c.b16 %v790, %v787
    %v902 = vpack.c.b16 %v791, %v788
    %v903 = vpack.c.b16 %v795, %v792
    %v904 = vpack.c.b16 %v796, %v793
    %v905 = vpack.c.b16 %v797, %v794
    %v906 = vpack.c.b16 %v801, %v798
    %v907 = vpack.c.b16 %v802, %v799
    %v908 = vpack.c.b16 %v803, %v800
    %v909 = vpack.c.b16 %v807, %v804
    %v910 = vpack.c.b16 %v808, %v805
    %v911 = vpack.c.b16 %v809, %v806
    %v912 = vpack.c.b16 %v813, %v810
    %v913 = vpack.c.b16 %v814, %v811
    %v914 = vpack.c.b16 %v815, %v812
    %v915 = vpack.c.b16 %v819, %v816
    %v916 = vpack.c.b16 %v820, %v817
    %v917 = vpack.c.b16 %v821, %v818
    %v918 = vpack.c.b16 %v825, %v822
    %v919 = vpack.c.b16 %v826, %v823
    %v920 = vpack.c.b16 %v827, %v824
    %v921 = vpack.c.b16 %v831, %v828
    %v922 = vpack.c.b16 %v832, %v829
    %v923 = vpack.c.b16 %v833, %v830
    %v924 = vpack.c.b16 %v837, %v834
    %v925 = vpack.c.b16 %v838, %v835
    %v926 = vpack.c.b16 %v839, %v836
    %v927 = vpack.c.b16 %v843, %v840
    %v928 = vpack.c.b16 %v844, %v841
    %v929 = vpack.c.b16 %v845, %v842
    %v930 = vpack.c.b16 %v849, %v846
    %v931 = vpack.c.b16 %v850, %v847
    %v932 = vpack.c.b16 %v851, %v848
    %v933 = vpack.c.b16 %v855, %v852
    %v934 = vpack.c.b16 %v856, %v853
    %v935 = vpack.c.b16 %v857, %v854
    %v936 = vpack.c.b16 %v861, %v858
    %v937 = vpack.c.b16 %v862, %v859
    %v938 = vpack.c.b16 %v863, %v860
    %vm1014 = vcmask 130048
    %v1016 = vsel %vm1014, %v468, 0
    %v1019 = vsel %vm1014, %v472, 0
    %v1022 = vsel %vm1014, %v476, 0
    %v1025 = vsel %vm1014, %v480, 0
    %v1028 = vsel %vm1014, %v484, 0
    %v1031 = vsel %vm1014, %v488, 0
    %v1034 = vsel %vm1014, %v492, 0
    %v1037 = vsel %vm1014, %v496, 0
    %1039 = vmatprep.subr.bf16.mxu0 %v865
    %1040 = vmatpush1.bf16.msra.mxu0 %v864
    %1041 = vmatprep.subr.bf16.mxu0 %v868
    %1042 = vmatpush1.bf16.msra.mxu0 %v867
    %1043 = vmatprep.subr.bf16.mxu0 %v871
    %1044 = vmatpush1.bf16.msra.mxu0 %v870
    %1045 = vmatprep.subr.bf16.mxu0 %v874
    %1046 = vmatpush1.bf16.msra.mxu0 %v873
    %1047 = vmatprep.subr.bf16.mxu0 %v877
    %1048 = vmatpush1.bf16.msra.mxu0 %v876
    %1049 = vmatprep.subr.bf16.mxu0 %v880
    %1050 = vmatpush1.bf16.msra.mxu0 %v879
    %1051 = vmatprep.subr.bf16.mxu0 %v883
    %1052 = vmatpush1.bf16.msra.mxu0 %v882
    %1053 = vmatprep.subr.bf16.mxu0 %v886
    %1054 = vmatpush1.bf16.msra.mxu0 %v885
    %1055 = vmatprep.subr.bf16.mxu0 %v889
    %1056 = vmatpush1.bf16.msra.mxu0 %v888
    %1057 = vmatprep.subr.bf16.mxu0 %v892
    %1058 = vmatpush1.bf16.msra.mxu0 %v891
    %1059 = vmatprep.subr.bf16.mxu0 %v895
    %1060 = vmatpush1.bf16.msra.mxu0 %v894
    %1061 = vmatprep.subr.bf16.mxu0 %v898
    %1062 = vmatpush1.bf16.msra.mxu0 %v897
    %1063 = vmatprep.subr.bf16.mxu0 %v901
    %1064 = vmatpush1.bf16.msra.mxu0 %v900
    %1065 = vmatprep.subr.bf16.mxu0 %v904
    %1066 = vmatpush1.bf16.msra.mxu0 %v903
    %1067 = vmatprep.subr.bf16.mxu0 %v907
    %1068 = vmatpush1.bf16.msra.mxu0 %v906
    %1069 = vmatprep.subr.bf16.mxu0 %v910
    %1070 = vmatpush1.bf16.msra.mxu0 %v909
    %1071 = vmatprep.mubr.bf16.mxu0 %v466
    %1072 = vmatmul.mubr.bf16.gmra.mrb[0].mxu0 %v465
    %v1073 = vpop.f32.mrb[0].mxu0
    %v1074 = vadd.f32 %v602, %v1073
    %v1075 = vpop.f32.mrb[0].mxu0
    %v1076 = vadd.f32 %v606, %v1075
    %v1077 = vpop.f32.mrb[0].mxu0
    %v1078 = vadd.f32 %v602, %v1077
    %v1079 = vpop.f32.mrb[0].mxu0
    %v1080 = vadd.f32 %v606, %v1079
    %1081 = vmatprep.mubr.bf16.mxu0 %v470
    %1082 = vmatmul.mubr.bf16.gmra.mrb[0].mxu0 %v469
    %v1083 = vpop.f32.mrb[0].mxu0
    %v1084 = vadd.f32 %v602, %v1083
    %v1085 = vpop.f32.mrb[0].mxu0
    %v1086 = vadd.f32 %v606, %v1085
    %v1087 = vpop.f32.mrb[0].mxu0
    %v1088 = vadd.f32 %v602, %v1087
    %v1089 = vpop.f32.mrb[0].mxu0
    %v1090 = vadd.f32 %v606, %v1089
    %1091 = vmatprep.mubr.bf16.mxu0 %v474
    %1092 = vmatmul.mubr.bf16.gmra.mrb[0].mxu0 %v473
    %v1093 = vpop.f32.mrb[0].mxu0
    %v1094 = vadd.f32 %v602, %v1093
    %v1095 = vpop.f32.mrb[0].mxu0
    %v1096 = vadd.f32 %v606, %v1095
    %v1097 = vpop.f32.mrb[0].mxu0
    %v1098 = vadd.f32 %v602, %v1097
    %v1099 = vpop.f32.mrb[0].mxu0
    %v1100 = vadd.f32 %v606, %v1099
    %1101 = vmatprep.mubr.bf16.mxu0 %v478
    %1102 = vmatmul.mubr.bf16.gmra.mrb[0].mxu0 %v477
    %v1103 = vpop.f32.mrb[0].mxu0
    %v1104 = vadd.f32 %v602, %v1103
    %v1105 = vpop.f32.mrb[0].mxu0
    %v1106 = vadd.f32 %v606, %v1105
    %v1107 = vpop.f32.mrb[0].mxu0
    %v1108 = vadd.f32 %v602, %v1107
    %v1109 = vpop.f32.mrb[0].mxu0
    %v1110 = vadd.f32 %v606, %v1109
    %1111 = vmatprep.mubr.bf16.mxu0 %v482
    %1112 = vmatmul.mubr.bf16.gmra.mrb[0].mxu0 %v481
    %v1113 = vpop.f32.mrb[0].mxu0
    %v1114 = vadd.f32 %v602, %v1113
    %v1115 = vpop.f32.mrb[0].mxu0
    %v1116 = vadd.f32 %v606, %v1115
    %v1117 = vpop.f32.mrb[0].mxu0
    %v1118 = vadd.f32 %v602, %v1117
    %v1119 = vpop.f32.mrb[0].mxu0
    %v1120 = vadd.f32 %v606, %v1119
    %1121 = vmatprep.mubr.bf16.mxu0 %v486
    %1122 = vmatmul.mubr.bf16.gmra.mrb[0].mxu0 %v485
    %v1123 = vpop.f32.mrb[0].mxu0
    %v1124 = vadd.f32 %v602, %v1123
    %v1125 = vpop.f32.mrb[0].mxu0
    %v1126 = vadd.f32 %v606, %v1125
    %v1127 = vpop.f32.mrb[0].mxu0
    %v1128 = vadd.f32 %v602, %v1127
    %v1129 = vpop.f32.mrb[0].mxu0
    %v1130 = vadd.f32 %v606, %v1129
    %1131 = vmatprep.mubr.bf16.mxu0 %v490
    %1132 = vmatmul.mubr.bf16.gmra.mrb[0].mxu0 %v489
    %v1133 = vpop.f32.mrb[0].mxu0
    %v1134 = vadd.f32 %v602, %v1133
    %v1135 = vpop.f32.mrb[0].mxu0
    %v1136 = vadd.f32 %v606, %v1135
    %v1137 = vpop.f32.mrb[0].mxu0
    %v1138 = vadd.f32 %v602, %v1137
    %v1139 = vpop.f32.mrb[0].mxu0
    %v1140 = vadd.f32 %v606, %v1139
    %1141 = vmatprep.mubr.bf16.mxu0 %v494
    %1142 = vmatmul.mubr.bf16.gmra.mrb[0].mxu0 %v493
    %v1143 = vpop.f32.mrb[0].mxu0
    %v1144 = vadd.f32 %v602, %v1143
    %v1145 = vpop.f32.mrb[0].mxu0
    %v1146 = vadd.f32 %v606, %v1145
    %v1147 = vpop.f32.mrb[0].mxu0
    %v1148 = vadd.f32 %v602, %v1147
    %v1149 = vpop.f32.mrb[0].mxu0
    %v1150 = vadd.f32 %v606, %v1149
    %1151 = vdwg.mxu0
    %1152 = vmatprep.subr.bf16.mxu0 %v913
    %1153 = vmatpush1.bf16.msra.mxu0 %v912
    %1154 = vmatprep.subr.bf16.mxu0 %v916
    %1155 = vmatpush1.bf16.msra.mxu0 %v915
    %1156 = vmatprep.subr.bf16.mxu0 %v919
    %1157 = vmatpush1.bf16.msra.mxu0 %v918
    %1158 = vmatprep.subr.bf16.mxu0 %v922
    %1159 = vmatpush1.bf16.msra.mxu0 %v921
    %1160 = vmatprep.subr.bf16.mxu0 %v925
    %1161 = vmatpush1.bf16.msra.mxu0 %v924
    %1162 = vmatprep.subr.bf16.mxu0 %v928
    %1163 = vmatpush1.bf16.msra.mxu0 %v927
    %1164 = vmatprep.subr.bf16.mxu0 %v931
    %1165 = vmatpush1.bf16.msra.mxu0 %v930
    %1166 = vmatprep.subr.bf16.mxu0 %v934
    %1167 = vmatpush1.bf16.msra.mxu0 %v933
    %1168 = vmatprep.subr.bf16.mxu0 %v937
    %1169 = vmatpush1.bf16.msra.mxu0 %v936
    %1170 = vmatprep.subr.bf16.mxu0 0
    %1171 = vmatpush1.bf16.msra.mxu0 0
    %1172 = vmatprep.subr.bf16.mxu0 0
    %1173 = vmatpush1.bf16.msra.mxu0 0
    %1174 = vmatprep.subr.bf16.mxu0 0
    %1175 = vmatpush1.bf16.msra.mxu0 0
    %1176 = vmatprep.subr.bf16.mxu0 0
    %1177 = vmatpush1.bf16.msra.mxu0 0
    %1178 = vmatprep.subr.bf16.mxu0 0
    %1179 = vmatpush1.bf16.msra.mxu0 0
    %1180 = vmatprep.subr.bf16.mxu0 0
    %1181 = vmatpush1.bf16.msra.mxu0 0
    %1182 = vmatprep.subr.bf16.mxu0 0
    %1183 = vmatpush1.bf16.msra.mxu0 0
    %1184 = vmatprep.mubr.bf16.mxu0 %v1016
    %1185 = vmatmul.mubr.bf16.gmra.mrb[0].mxu0 %v467
    %v1186 = vpop.f32.mrb[0].mxu0
    %v1187 = vadd.f32 %v1074, %v1186
    %v1188 = vpop.f32.mrb[0].mxu0
    %v1189 = vadd.f32 %v1076, %v1188
    %v1190 = vpop.f32.mrb[0].mxu0
    %v1191 = vadd.f32 %v1078, %v1190
    %v1192 = vpop.f32.mrb[0].mxu0
    %v1193 = vadd.f32 %v1080, %v1192
    %1194 = vmatprep.mubr.bf16.mxu0 %v1019
    %1195 = vmatmul.mubr.bf16.gmra.mrb[0].mxu0 %v471
    %v1196 = vpop.f32.mrb[0].mxu0
    %v1197 = vadd.f32 %v1084, %v1196
    %v1198 = vpop.f32.mrb[0].mxu0
    %v1199 = vadd.f32 %v1086, %v1198
    %v1200 = vpop.f32.mrb[0].mxu0
    %v1201 = vadd.f32 %v1088, %v1200
    %v1202 = vpop.f32.mrb[0].mxu0
    %v1203 = vadd.f32 %v1090, %v1202
    %1204 = vmatprep.mubr.bf16.mxu0 %v1022
    %1205 = vmatmul.mubr.bf16.gmra.mrb[0].mxu0 %v475
    %v1206 = vpop.f32.mrb[0].mxu0
    %v1207 = vadd.f32 %v1094, %v1206
    %v1208 = vpop.f32.mrb[0].mxu0
    %v1209 = vadd.f32 %v1096, %v1208
    %v1210 = vpop.f32.mrb[0].mxu0
    %v1211 = vadd.f32 %v1098, %v1210
    %v1212 = vpop.f32.mrb[0].mxu0
    %v1213 = vadd.f32 %v1100, %v1212
    %1214 = vmatprep.mubr.bf16.mxu0 %v1025
    %1215 = vmatmul.mubr.bf16.gmra.mrb[0].mxu0 %v479
    %v1216 = vpop.f32.mrb[0].mxu0
    %v1217 = vadd.f32 %v1104, %v1216
    %v1218 = vpop.f32.mrb[0].mxu0
    %v1219 = vadd.f32 %v1106, %v1218
    %v1220 = vpop.f32.mrb[0].mxu0
    %v1221 = vadd.f32 %v1108, %v1220
    %v1222 = vpop.f32.mrb[0].mxu0
    %v1223 = vadd.f32 %v1110, %v1222
    %1224 = vmatprep.mubr.bf16.mxu0 %v1028
    %1225 = vmatmul.mubr.bf16.gmra.mrb[0].mxu0 %v483
    %v1226 = vpop.f32.mrb[0].mxu0
    %v1227 = vadd.f32 %v1114, %v1226
    %v1228 = vpop.f32.mrb[0].mxu0
    %v1229 = vadd.f32 %v1116, %v1228
    %v1230 = vpop.f32.mrb[0].mxu0
    %v1231 = vadd.f32 %v1118, %v1230
    %v1232 = vpop.f32.mrb[0].mxu0
    %v1233 = vadd.f32 %v1120, %v1232
    %1234 = vmatprep.mubr.bf16.mxu0 %v1031
    %1235 = vmatmul.mubr.bf16.gmra.mrb[0].mxu0 %v487
    %v1236 = vpop.f32.mrb[0].mxu0
    %v1237 = vadd.f32 %v1124, %v1236
    %v1238 = vpop.f32.mrb[0].mxu0
    %v1239 = vadd.f32 %v1126, %v1238
    %v1240 = vpop.f32.mrb[0].mxu0
    %v1241 = vadd.f32 %v1128, %v1240
    %v1242 = vpop.f32.mrb[0].mxu0
    %v1243 = vadd.f32 %v1130, %v1242
    %1244 = vmatprep.mubr.bf16.mxu0 %v1034
    %1245 = vmatmul.mubr.bf16.gmra.mrb[0].mxu0 %v491
    %v1246 = vpop.f32.mrb[0].mxu0
    %v1247 = vadd.f32 %v1134, %v1246
    %v1248 = vpop.f32.mrb[0].mxu0
    %v1249 = vadd.f32 %v1136, %v1248
    %v1250 = vpop.f32.mrb[0].mxu0
    %v1251 = vadd.f32 %v1138, %v1250
    %v1252 = vpop.f32.mrb[0].mxu0
    %v1253 = vadd.f32 %v1140, %v1252
    %1254 = vmatprep.mubr.bf16.mxu0 %v1037
    %1255 = vmatmul.mubr.bf16.gmra.mrb[0].mxu0 %v495
    %v1256 = vpop.f32.mrb[0].mxu0
    %v1257 = vadd.f32 %v1144, %v1256
    %v1258 = vpop.f32.mrb[0].mxu0
    %v1259 = vadd.f32 %v1146, %v1258
    %v1260 = vpop.f32.mrb[0].mxu0
    %v1261 = vadd.f32 %v1148, %v1260
    %v1262 = vpop.f32.mrb[0].mxu0
    %v1263 = vadd.f32 %v1150, %v1262
    %1264 = vdwg.mxu0
    %1265 = vmatprep.subr.bf16.mxu0 0
    %1266 = vmatpush1.bf16.msra.mxu0 %v866
    %1267 = vmatprep.subr.bf16.mxu0 0
    %1268 = vmatpush1.bf16.msra.mxu0 %v869
    %1269 = vmatprep.subr.bf16.mxu0 0
    %1270 = vmatpush1.bf16.msra.mxu0 %v872
    %1271 = vmatprep.subr.bf16.mxu0 0
    %1272 = vmatpush1.bf16.msra.mxu0 %v875
    %1273 = vmatprep.subr.bf16.mxu0 0
    %1274 = vmatpush1.bf16.msra.mxu0 %v878
    %1275 = vmatprep.subr.bf16.mxu0 0
    %1276 = vmatpush1.bf16.msra.mxu0 %v881
    %1277 = vmatprep.subr.bf16.mxu0 0
    %1278 = vmatpush1.bf16.msra.mxu0 %v884
    %1279 = vmatprep.subr.bf16.mxu0 0
    %1280 = vmatpush1.bf16.msra.mxu0 %v887
    %1281 = vmatprep.subr.bf16.mxu0 0
    %1282 = vmatpush1.bf16.msra.mxu0 %v890
    %1283 = vmatprep.subr.bf16.mxu0 0
    %1284 = vmatpush1.bf16.msra.mxu0 %v893
    %1285 = vmatprep.subr.bf16.mxu0 0
    %1286 = vmatpush1.bf16.msra.mxu0 %v896
    %1287 = vmatprep.subr.bf16.mxu0 0
    %1288 = vmatpush1.bf16.msra.mxu0 %v899
    %1289 = vmatprep.subr.bf16.mxu0 0
    %1290 = vmatpush1.bf16.msra.mxu0 %v902
    %1291 = vmatprep.subr.bf16.mxu0 0
    %1292 = vmatpush1.bf16.msra.mxu0 %v905
    %1293 = vmatprep.subr.bf16.mxu0 0
    %1294 = vmatpush1.bf16.msra.mxu0 %v908
    %1295 = vmatprep.subr.bf16.mxu0 0
    %1296 = vmatpush1.bf16.msra.mxu0 %v911
    %1297 = vmatprep.mubr.bf16.mxu0 %v466
    %1298 = vmatmul.mubr.bf16.gmra.mrb[0].mxu0 %v465
    %v1299 = vpop.f32.mrb[0].mxu0
    %v1300 = vadd.f32 %v610, %v1299
    %v1301 = vpop.f32.mrb[0].mxu0
    %v1302 = vpop.f32.mrb[0].mxu0
    %v1303 = vadd.f32 %v610, %v1302
    %v1304 = vpop.f32.mrb[0].mxu0
    %1305 = vmatprep.mubr.bf16.mxu0 %v470
    %1306 = vmatmul.mubr.bf16.gmra.mrb[0].mxu0 %v469
    %v1307 = vpop.f32.mrb[0].mxu0
    %v1308 = vadd.f32 %v610, %v1307
    %v1309 = vpop.f32.mrb[0].mxu0
    %v1310 = vpop.f32.mrb[0].mxu0
    %v1311 = vadd.f32 %v610, %v1310
    %v1312 = vpop.f32.mrb[0].mxu0
    %1313 = vmatprep.mubr.bf16.mxu0 %v474
    %1314 = vmatmul.mubr.bf16.gmra.mrb[0].mxu0 %v473
    %v1315 = vpop.f32.mrb[0].mxu0
    %v1316 = vadd.f32 %v610, %v1315
    %v1317 = vpop.f32.mrb[0].mxu0
    %v1318 = vpop.f32.mrb[0].mxu0
    %v1319 = vadd.f32 %v610, %v1318
    %v1320 = vpop.f32.mrb[0].mxu0
    %1321 = vmatprep.mubr.bf16.mxu0 %v478
    %1322 = vmatmul.mubr.bf16.gmra.mrb[0].mxu0 %v477
    %v1323 = vpop.f32.mrb[0].mxu0
    %v1324 = vadd.f32 %v610, %v1323
    %v1325 = vpop.f32.mrb[0].mxu0
    %v1326 = vpop.f32.mrb[0].mxu0
    %v1327 = vadd.f32 %v610, %v1326
    %v1328 = vpop.f32.mrb[0].mxu0
    %1329 = vmatprep.mubr.bf16.mxu0 %v482
    %1330 = vmatmul.mubr.bf16.gmra.mrb[0].mxu0 %v481
    %v1331 = vpop.f32.mrb[0].mxu0
    %v1332 = vadd.f32 %v610, %v1331
    %v1333 = vpop.f32.mrb[0].mxu0
    %v1334 = vpop.f32.mrb[0].mxu0
    %v1335 = vadd.f32 %v610, %v1334
    %v1336 = vpop.f32.mrb[0].mxu0
    %1337 = vmatprep.mubr.bf16.mxu0 %v486
    %1338 = vmatmul.mubr.bf16.gmra.mrb[0].mxu0 %v485
    %v1339 = vpop.f32.mrb[0].mxu0
    %v1340 = vadd.f32 %v610, %v1339
    %v1341 = vpop.f32.mrb[0].mxu0
    %v1342 = vpop.f32.mrb[0].mxu0
    %v1343 = vadd.f32 %v610, %v1342
    %v1344 = vpop.f32.mrb[0].mxu0
    %1345 = vmatprep.mubr.bf16.mxu0 %v490
    %1346 = vmatmul.mubr.bf16.gmra.mrb[0].mxu0 %v489
    %v1347 = vpop.f32.mrb[0].mxu0
    %v1348 = vadd.f32 %v610, %v1347
    %v1349 = vpop.f32.mrb[0].mxu0
    %v1350 = vpop.f32.mrb[0].mxu0
    %v1351 = vadd.f32 %v610, %v1350
    %v1352 = vpop.f32.mrb[0].mxu0
    %1353 = vmatprep.mubr.bf16.mxu0 %v494
    %1354 = vmatmul.mubr.bf16.gmra.mrb[0].mxu0 %v493
    %v1355 = vpop.f32.mrb[0].mxu0
    %v1356 = vadd.f32 %v610, %v1355
    %v1357 = vpop.f32.mrb[0].mxu0
    %v1358 = vpop.f32.mrb[0].mxu0
    %v1359 = vadd.f32 %v610, %v1358
    %v1360 = vpop.f32.mrb[0].mxu0
    %1361 = vdwg.mxu0
    %1362 = vmatprep.subr.bf16.mxu0 0
    %1363 = vmatpush1.bf16.msra.mxu0 %v914
    %1364 = vmatprep.subr.bf16.mxu0 0
    %1365 = vmatpush1.bf16.msra.mxu0 %v917
    %1366 = vmatprep.subr.bf16.mxu0 0
    %1367 = vmatpush1.bf16.msra.mxu0 %v920
    %1368 = vmatprep.subr.bf16.mxu0 0
    %1369 = vmatpush1.bf16.msra.mxu0 %v923
    %1370 = vmatprep.subr.bf16.mxu0 0
    %1371 = vmatpush1.bf16.msra.mxu0 %v926
    %1372 = vmatprep.subr.bf16.mxu0 0
    %1373 = vmatpush1.bf16.msra.mxu0 %v929
    %1374 = vmatprep.subr.bf16.mxu0 0
    %1375 = vmatpush1.bf16.msra.mxu0 %v932
    %1376 = vmatprep.subr.bf16.mxu0 0
    %1377 = vmatpush1.bf16.msra.mxu0 %v935
    %1378 = vmatprep.subr.bf16.mxu0 0
    %1379 = vmatpush1.bf16.msra.mxu0 %v938
    %1380 = vmatprep.subr.bf16.mxu0 0
    %1381 = vmatpush1.bf16.msra.mxu0 0
    %1382 = vmatprep.subr.bf16.mxu0 0
    %1383 = vmatpush1.bf16.msra.mxu0 0
    %1384 = vmatprep.subr.bf16.mxu0 0
    %1385 = vmatpush1.bf16.msra.mxu0 0
    %1386 = vmatprep.subr.bf16.mxu0 0
    %1387 = vmatpush1.bf16.msra.mxu0 0
    %1388 = vmatprep.subr.bf16.mxu0 0
    %1389 = vmatpush1.bf16.msra.mxu0 0
    %1390 = vmatprep.subr.bf16.mxu0 0
    %1391 = vmatpush1.bf16.msra.mxu0 0
    %1392 = vmatprep.subr.bf16.mxu0 0
    %1393 = vmatpush1.bf16.msra.mxu0 0
    %1394 = vmatprep.mubr.bf16.mxu0 %v1016
    %1395 = vmatmul.mubr.bf16.gmra.mrb[0].mxu0 %v467
    %v1396 = vpop.f32.mrb[0].mxu0
    %v1397 = vadd.f32 %v1300, %v1396
    %v1398 = vpop.f32.mrb[0].mxu0
    %v1399 = vpop.f32.mrb[0].mxu0
    %v1400 = vadd.f32 %v1303, %v1399
    %v1401 = vpop.f32.mrb[0].mxu0
    %1402 = vmatprep.mubr.bf16.mxu0 %v1019
    %1403 = vmatmul.mubr.bf16.gmra.mrb[0].mxu0 %v471
    %v1404 = vpop.f32.mrb[0].mxu0
    %v1405 = vadd.f32 %v1308, %v1404
    %v1406 = vpop.f32.mrb[0].mxu0
    %v1407 = vpop.f32.mrb[0].mxu0
    %v1408 = vadd.f32 %v1311, %v1407
    %v1409 = vpop.f32.mrb[0].mxu0
    %1410 = vmatprep.mubr.bf16.mxu0 %v1022
    %1411 = vmatmul.mubr.bf16.gmra.mrb[0].mxu0 %v475
    %v1412 = vpop.f32.mrb[0].mxu0
    %v1413 = vadd.f32 %v1316, %v1412
    %v1414 = vpop.f32.mrb[0].mxu0
    %v1415 = vpop.f32.mrb[0].mxu0
    %v1416 = vadd.f32 %v1319, %v1415
    %v1417 = vpop.f32.mrb[0].mxu0
    %1418 = vmatprep.mubr.bf16.mxu0 %v1025
    %1419 = vmatmul.mubr.bf16.gmra.mrb[0].mxu0 %v479
    %v1420 = vpop.f32.mrb[0].mxu0
    %v1421 = vadd.f32 %v1324, %v1420
    %v1422 = vpop.f32.mrb[0].mxu0
    %v1423 = vpop.f32.mrb[0].mxu0
    %v1424 = vadd.f32 %v1327, %v1423
    %v1425 = vpop.f32.mrb[0].mxu0
    %1426 = vmatprep.mubr.bf16.mxu0 %v1028
    %1427 = vmatmul.mubr.bf16.gmra.mrb[0].mxu0 %v483
    %v1428 = vpop.f32.mrb[0].mxu0
    %v1429 = vadd.f32 %v1332, %v1428
    %v1430 = vpop.f32.mrb[0].mxu0
    %v1431 = vpop.f32.mrb[0].mxu0
    %v1432 = vadd.f32 %v1335, %v1431
    %v1433 = vpop.f32.mrb[0].mxu0
    %1434 = vmatprep.mubr.bf16.mxu0 %v1031
    %1435 = vmatmul.mubr.bf16.gmra.mrb[0].mxu0 %v487
    %v1436 = vpop.f32.mrb[0].mxu0
    %v1437 = vadd.f32 %v1340, %v1436
    %v1438 = vpop.f32.mrb[0].mxu0
    %v1439 = vpop.f32.mrb[0].mxu0
    %v1440 = vadd.f32 %v1343, %v1439
    %v1441 = vpop.f32.mrb[0].mxu0
    %1442 = vmatprep.mubr.bf16.mxu0 %v1034
    %1443 = vmatmul.mubr.bf16.gmra.mrb[0].mxu0 %v491
    %v1444 = vpop.f32.mrb[0].mxu0
    %v1445 = vadd.f32 %v1348, %v1444
    %v1446 = vpop.f32.mrb[0].mxu0
    %v1447 = vpop.f32.mrb[0].mxu0
    %v1448 = vadd.f32 %v1351, %v1447
    %v1449 = vpop.f32.mrb[0].mxu0
    %1450 = vmatprep.mubr.bf16.mxu0 %v1037
    %1451 = vmatmul.mubr.bf16.gmra.mrb[0].mxu0 %v495
    %v1452 = vpop.f32.mrb[0].mxu0
    %v1453 = vadd.f32 %v1356, %v1452
    %v1454 = vpop.f32.mrb[0].mxu0
    %v1455 = vpop.f32.mrb[0].mxu0
    %v1456 = vadd.f32 %v1359, %v1455
    %v1457 = vpop.f32.mrb[0].mxu0
    %1458 = vdwg.mxu0
    %v1459 = vmax.f32 %v1187, 0.0
    %v1460 = vmax.f32 %v1189, 0.0
    %v1461 = vmax.f32 %v1397, 0.0
    %v1462 = vmax.f32 %v1191, 0.0
    %v1463 = vmax.f32 %v1193, 0.0
    %v1464 = vmax.f32 %v1400, 0.0
    %v1465 = vmax.f32 %v1197, 0.0
    %v1466 = vmax.f32 %v1199, 0.0
    %v1467 = vmax.f32 %v1405, 0.0
    %v1468 = vmax.f32 %v1201, 0.0
    %v1469 = vmax.f32 %v1203, 0.0
    %v1470 = vmax.f32 %v1408, 0.0
    %v1471 = vmax.f32 %v1207, 0.0
    %v1472 = vmax.f32 %v1209, 0.0
    %v1473 = vmax.f32 %v1413, 0.0
    %v1474 = vmax.f32 %v1211, 0.0
    %v1475 = vmax.f32 %v1213, 0.0
    %v1476 = vmax.f32 %v1416, 0.0
    %v1477 = vmax.f32 %v1217, 0.0
    %v1478 = vmax.f32 %v1219, 0.0
    %v1479 = vmax.f32 %v1421, 0.0
    %v1480 = vmax.f32 %v1221, 0.0
    %v1481 = vmax.f32 %v1223, 0.0
    %v1482 = vmax.f32 %v1424, 0.0
    %v1483 = vmax.f32 %v1227, 0.0
    %v1484 = vmax.f32 %v1229, 0.0
    %v1485 = vmax.f32 %v1429, 0.0
    %v1486 = vmax.f32 %v1231, 0.0
    %v1487 = vmax.f32 %v1233, 0.0
    %v1488 = vmax.f32 %v1432, 0.0
    %v1489 = vmax.f32 %v1237, 0.0
    %v1490 = vmax.f32 %v1239, 0.0
    %v1491 = vmax.f32 %v1437, 0.0
    %v1492 = vmax.f32 %v1241, 0.0
    %v1493 = vmax.f32 %v1243, 0.0
    %v1494 = vmax.f32 %v1440, 0.0
    %v1495 = vmax.f32 %v1247, 0.0
    %v1496 = vmax.f32 %v1249, 0.0
    %v1497 = vmax.f32 %v1445, 0.0
    %v1498 = vmax.f32 %v1251, 0.0
    %v1499 = vmax.f32 %v1253, 0.0
    %v1500 = vmax.f32 %v1448, 0.0
    %v1501 = vmax.f32 %v1257, 0.0
    %v1502 = vmax.f32 %v1259, 0.0
    %v1503 = vmax.f32 %v1453, 0.0
    %v1504 = vmax.f32 %v1261, 0.0
    %v1505 = vmax.f32 %v1263, 0.0
    %v1506 = vmax.f32 %v1456, 0.0
    %v1507 = vld [vmem:[%s5] sm:$0x7]
    %v1509 = vlaneseq
    %v1510 = vshrl.u32 %v1509, 7
    %v1511 = vsub.s32 0, %v1510
    %v1512 = vrot.slane %v1507, %v1511
    %v1513 = vlaneseq
    %v1514 = vshrl.u32 %v1513, 7
    %v1515 = vsub.s32 1, %v1514
    %v1516 = vrot.slane %v1507, %v1515
    %v1517 = vlaneseq
    %v1518 = vshrl.u32 %v1517, 7
    %v1519 = vsub.s32 2, %v1518
    %v1520 = vrot.slane %v1507, %v1519
    %v1524 = vmul.f32 %v1459, %v1512
    %v1525 = vmul.f32 %v1460, %v1516
    %v1526 = vmul.f32 %v1461, %v1520
    %v1527 = vmul.f32 %v1462, %v1512
    %v1528 = vmul.f32 %v1463, %v1516
    %v1529 = vmul.f32 %v1464, %v1520
    %v1530 = vmul.f32 %v1465, %v1512
    %v1531 = vmul.f32 %v1466, %v1516
    %v1532 = vmul.f32 %v1467, %v1520
    %v1533 = vmul.f32 %v1468, %v1512
    %v1534 = vmul.f32 %v1469, %v1516
    %v1535 = vmul.f32 %v1470, %v1520
    %v1536 = vmul.f32 %v1471, %v1512
    %v1537 = vmul.f32 %v1472, %v1516
    %v1538 = vmul.f32 %v1473, %v1520
    %v1539 = vmul.f32 %v1474, %v1512
    %v1540 = vmul.f32 %v1475, %v1516
    %v1541 = vmul.f32 %v1476, %v1520
    %v1542 = vmul.f32 %v1477, %v1512
    %v1543 = vmul.f32 %v1478, %v1516
    %v1544 = vmul.f32 %v1479, %v1520
    %v1545 = vmul.f32 %v1480, %v1512
    %v1546 = vmul.f32 %v1481, %v1516
    %v1547 = vmul.f32 %v1482, %v1520
    %v1548 = vmul.f32 %v1483, %v1512
    %v1549 = vmul.f32 %v1484, %v1516
    %v1550 = vmul.f32 %v1485, %v1520
    %v1551 = vmul.f32 %v1486, %v1512
    %v1552 = vmul.f32 %v1487, %v1516
    %v1553 = vmul.f32 %v1488, %v1520
    %v1554 = vmul.f32 %v1489, %v1512
    %v1555 = vmul.f32 %v1490, %v1516
    %v1556 = vmul.f32 %v1491, %v1520
    %v1557 = vmul.f32 %v1492, %v1512
    %v1558 = vmul.f32 %v1493, %v1516
    %v1559 = vmul.f32 %v1494, %v1520
    %v1560 = vmul.f32 %v1495, %v1512
    %v1561 = vmul.f32 %v1496, %v1516
    %v1562 = vmul.f32 %v1497, %v1520
    %v1563 = vmul.f32 %v1498, %v1512
    %v1564 = vmul.f32 %v1499, %v1516
    %v1565 = vmul.f32 %v1500, %v1520
    %v1566 = vmul.f32 %v1501, %v1512
    %v1567 = vmul.f32 %v1502, %v1516
    %v1568 = vmul.f32 %v1503, %v1520
    %v1569 = vmul.f32 %v1504, %v1512
    %v1570 = vmul.f32 %v1505, %v1516
    %v1571 = vmul.f32 %v1506, %v1520
    %v1572 = vadd.f32 %v1524, %v1525
    %vm1573 = vcmask 359424
    %v1574 = vsel %vm1573, %v1526, 0.0
    %v1575 = vadd.f32 %v1572, %v1574
    %1576 = vadd.xlane.f32.xlu0 %v1575
    %v1577 = vpop.xlane.xlu0 %1576
    %v1578 = vadd.f32 %v1527, %v1528
    %v1579 = vsel %vm1573, %v1529, 0.0
    %v1580 = vadd.f32 %v1578, %v1579
    %1581 = vadd.xlane.f32.xlu0 %v1580
    %v1582 = vpop.xlane.xlu0 %1581
    %v1583 = vadd.f32 %v1530, %v1531
    %v1584 = vsel %vm1573, %v1532, 0.0
    %v1585 = vadd.f32 %v1583, %v1584
    %1586 = vadd.xlane.f32.xlu0 %v1585
    %v1587 = vpop.xlane.xlu0 %1586
    %v1588 = vadd.f32 %v1533, %v1534
    %v1589 = vsel %vm1573, %v1535, 0.0
    %v1590 = vadd.f32 %v1588, %v1589
    %1591 = vadd.xlane.f32.xlu0 %v1590
    %v1592 = vpop.xlane.xlu0 %1591
    %v1593 = vadd.f32 %v1536, %v1537
    %v1594 = vsel %vm1573, %v1538, 0.0
    %v1595 = vadd.f32 %v1593, %v1594
    %1596 = vadd.xlane.f32.xlu0 %v1595
    %v1597 = vpop.xlane.xlu0 %1596
    %v1598 = vadd.f32 %v1539, %v1540
    %v1599 = vsel %vm1573, %v1541, 0.0
    %v1600 = vadd.f32 %v1598, %v1599
    %1601 = vadd.xlane.f32.xlu0 %v1600
    %v1602 = vpop.xlane.xlu0 %1601
    %v1603 = vadd.f32 %v1542, %v1543
    %v1604 = vsel %vm1573, %v1544, 0.0
    %v1605 = vadd.f32 %v1603, %v1604
    %1606 = vadd.xlane.f32.xlu0 %v1605
    %v1607 = vpop.xlane.xlu0 %1606
    %v1608 = vadd.f32 %v1545, %v1546
    %v1609 = vsel %vm1573, %v1547, 0.0
    %v1610 = vadd.f32 %v1608, %v1609
    %1611 = vadd.xlane.f32.xlu0 %v1610
    %v1612 = vpop.xlane.xlu0 %1611
    %v1613 = vadd.f32 %v1548, %v1549
    %v1614 = vsel %vm1573, %v1550, 0.0
    %v1615 = vadd.f32 %v1613, %v1614
    %1616 = vadd.xlane.f32.xlu0 %v1615
    %v1617 = vpop.xlane.xlu0 %1616
    %v1618 = vadd.f32 %v1551, %v1552
    %v1619 = vsel %vm1573, %v1553, 0.0
    %v1620 = vadd.f32 %v1618, %v1619
    %1621 = vadd.xlane.f32.xlu0 %v1620
    %v1622 = vpop.xlane.xlu0 %1621
    %v1623 = vadd.f32 %v1554, %v1555
    %v1624 = vsel %vm1573, %v1556, 0.0
    %v1625 = vadd.f32 %v1623, %v1624
    %1626 = vadd.xlane.f32.xlu0 %v1625
    %v1627 = vpop.xlane.xlu0 %1626
    %v1628 = vadd.f32 %v1557, %v1558
    %v1629 = vsel %vm1573, %v1559, 0.0
    %v1630 = vadd.f32 %v1628, %v1629
    %1631 = vadd.xlane.f32.xlu0 %v1630
    %v1632 = vpop.xlane.xlu0 %1631
    %v1633 = vadd.f32 %v1560, %v1561
    %v1634 = vsel %vm1573, %v1562, 0.0
    %v1635 = vadd.f32 %v1633, %v1634
    %1636 = vadd.xlane.f32.xlu0 %v1635
    %v1637 = vpop.xlane.xlu0 %1636
    %v1638 = vadd.f32 %v1563, %v1564
    %v1639 = vsel %vm1573, %v1565, 0.0
    %v1640 = vadd.f32 %v1638, %v1639
    %1641 = vadd.xlane.f32.xlu0 %v1640
    %v1642 = vpop.xlane.xlu0 %1641
    %v1643 = vadd.f32 %v1566, %v1567
    %v1644 = vsel %vm1573, %v1568, 0.0
    %v1645 = vadd.f32 %v1643, %v1644
    %1646 = vadd.xlane.f32.xlu0 %v1645
    %v1647 = vpop.xlane.xlu0 %1646
    %v1648 = vadd.f32 %v1569, %v1570
    %v1649 = vsel %vm1573, %v1571, 0.0
    %v1650 = vadd.f32 %v1648, %v1649
    %1651 = vadd.xlane.f32.xlu0 %v1650
    %v1652 = vpop.xlane.xlu0 %1651
    %s1653 = sld [smem:[#allocation2]]
    %v1654 = vstv %s1653
    %v1655 = vadd.f32 %v1577, %v1654
    %v1656 = vadd.f32 %v1582, %v1654
    %v1657 = vadd.f32 %v1587, %v1654
    %v1658 = vadd.f32 %v1592, %v1654
    %v1659 = vadd.f32 %v1597, %v1654
    %v1660 = vadd.f32 %v1602, %v1654
    %v1661 = vadd.f32 %v1607, %v1654
    %v1662 = vadd.f32 %v1612, %v1654
    %v1663 = vadd.f32 %v1617, %v1654
    %v1664 = vadd.f32 %v1622, %v1654
    %v1665 = vadd.f32 %v1627, %v1654
    %v1666 = vadd.f32 %v1632, %v1654
    %v1667 = vadd.f32 %v1637, %v1654
    %v1668 = vadd.f32 %v1642, %v1654
    %v1669 = vadd.f32 %v1647, %v1654
    %v1670 = vadd.f32 %v1652, %v1654
    %vm1671 = vcmask 7168
    %1672 = vst.msk [vmem:[#allocation7] sm:$0xff] %vm1671, %v1655
    %1673 = vst.msk [vmem:[#allocation7 + $0x8] sm:$0xff] %vm1671, %v1656
    %1674 = vst.msk [vmem:[#allocation7 + $0x10] sm:$0xff] %vm1671, %v1657
    %1675 = vst.msk [vmem:[#allocation7 + $0x18] sm:$0xff] %vm1671, %v1658
    %1676 = vst.msk [vmem:[#allocation7 + $0x20] sm:$0xff] %vm1671, %v1659
    %1677 = vst.msk [vmem:[#allocation7 + $0x28] sm:$0xff] %vm1671, %v1660
    %1678 = vst.msk [vmem:[#allocation7 + $0x30] sm:$0xff] %vm1671, %v1661
    %1679 = vst.msk [vmem:[#allocation7 + $0x38] sm:$0xff] %vm1671, %v1662
    %1680 = vst.msk [vmem:[#allocation7 + $0x40] sm:$0xff] %vm1671, %v1663
    %1681 = vst.msk [vmem:[#allocation7 + $0x48] sm:$0xff] %vm1671, %v1664
    %1682 = vst.msk [vmem:[#allocation7 + $0x50] sm:$0xff] %vm1671, %v1665
    %1683 = vst.msk [vmem:[#allocation7 + $0x58] sm:$0xff] %vm1671, %v1666
    %1684 = vst.msk [vmem:[#allocation7 + $0x60] sm:$0xff] %vm1671, %v1667
    %1685 = vst.msk [vmem:[#allocation7 + $0x68] sm:$0xff] %vm1671, %v1668
    %1686 = vst.msk [vmem:[#allocation7 + $0x70] sm:$0xff] %vm1671, %v1669
    %1687 = vst.msk [vmem:[#allocation7 + $0x78] sm:$0xff] %vm1671, %v1670
    // Predicated region
    $region38: #{critic_forward.1} parent=1 // pred_check
      _
    $region39: #{critic_forward.1} parent=1 // pred_check_branch
      %1689 = sbr.rel (0) target = $region41
    $region40: #{critic_forward.1} parent=1 // pred_region
      // Predicated region
      $region42: #{critic_forward.1} parent=40 // pred_check
        _
      $region43: #{critic_forward.1} parent=40 // pred_check_branch
        %1691 = sbr.rel (0) target = $region45
      $region44: #{critic_forward.1} parent=40 // pred_region
        // Predicated region
        $region46: #{critic_forward.1} parent=44 // pred_check
          _
        $region47: #{critic_forward.1} parent=44 // pred_check_branch
          %1693 = sbr.rel (0) target = $region49
        $region48: #{critic_forward.1} parent=44 // pred_region
          // Predicated region
          $region61: #{critic_forward.1} parent=48 // pred_check
            _
          $region62: #{critic_forward.1} parent=48 // pred_check_branch
            %1708 = sbr.rel (0) target = $region64
          $region63: #{critic_forward.1} parent=48 // pred_region
            loop: start=0, step=1, limit=1
            $region65: #{critic_forward.1} parent=63 // loop_pre_header
              _
            $region66: #{critic_forward.1} parent=63 // loop_header
              %s1710 = sphi 0, %s1714
              %p1711 = scmp.ge.s32.totalorder %s1710, 1
              %s1715 = sphi [#allocation7], [#allocation7]
              %s1716 = sphi %s7, %s7
            $region67: #{critic_forward.1} parent=63 // loop_header_branch
              %1713 = sbr.rel (%p1711) target = $region71
            $region68: #{critic_forward.1} parent=63 // loop_body
              %v1717 = vld [vmem:[%s1715] sm:$0xff]
              %1718 = vst [vmem:[%s1716] sm:$0xff] %v1717
            $region69: #{critic_forward.1} parent=63 // loop_footer
              %s1714 = sadd.s32 1, %s1710
            $region70: #{critic_forward.1} parent=63 // loop_footer_branch
              %1709 = sbr.rel target = $region66
            $region71: #{critic_forward.1} parent=63 // loop_exit
              _
          $region64: #{critic_forward.1} parent=48 // pred_fallthru
            _
          // Predicated region
          $region72: #{critic_forward.1} parent=48 // pred_check
            _
          $region73: #{critic_forward.1} parent=48 // pred_check_branch
            %1720 = sbr.rel target = $region75
          $region74: #{critic_forward.1} parent=48 // pred_region
            _
          $region75: #{critic_forward.1} parent=48 // pred_fallthru
            _
        $region49: #{critic_forward.1} parent=44 // pred_fallthru
          _
        // Predicated region
        $region50: #{critic_forward.1} parent=44 // pred_check
          _
        $region51: #{critic_forward.1} parent=44 // pred_check_branch
          %1695 = sbr.rel target = $region53
        $region52: #{critic_forward.1} parent=44 // pred_region
          loop: start=0, step=1, limit=1
          $region54: #{critic_forward.1} parent=52 // loop_pre_header
            _
          $region55: #{critic_forward.1} parent=52 // loop_header
            %s1698 = sphi 0, %s1702
            %p1699 = scmp.ge.s32.totalorder %s1698, 1
            %s1703 = sphi [#allocation7], [#allocation7]
            %s1704 = sphi %s7, %s7
          $region56: #{critic_forward.1} parent=52 // loop_header_branch
            %1701 = sbr.rel (%p1699) target = $region60
          $region57: #{critic_forward.1} parent=52 // loop_body
            %v1705 = vld [vmem:[%s1703] sm:$0xff]
            %1706 = vst [vmem:[%s1704] sm:$0xff] %v1705
          $region58: #{critic_forward.1} parent=52 // loop_footer
            %s1702 = sadd.s32 1, %s1698
          $region59: #{critic_forward.1} parent=52 // loop_footer_branch
            %1697 = sbr.rel target = $region55
          $region60: #{critic_forward.1} parent=52 // loop_exit
            _
        $region53: #{critic_forward.1} parent=44 // pred_fallthru
          _
      $region45: #{critic_forward.1} parent=40 // pred_fallthru
        _
      %1721 = vnop
    $region41: #{critic_forward.1} parent=1 // pred_fallthru
      _
    // Predicated region
    $region76: #{critic_forward.1} parent=1 // pred_check
      _
    $region77: #{critic_forward.1} parent=1 // pred_check_branch
      %1723 = sbr.rel (0) target = $region79
    $region78: #{critic_forward.1} parent=1 // pred_region
      _
    $region79: #{critic_forward.1} parent=1 // pred_fallthru
      _
    %1724 = vsyncpa [#allocation4], 1
    %1725 = vsyncpa [#allocation6], 1

</llo_original>
